<compile_context>
chip_gen: v6e
topology: v6e:2x2x1
jax: 0.10.0
libtpu: 0.0.40
codegen_flags: <defaults>
</compile_context>

<pallas_src>
from functools import partial

import jax
import jax.numpy as jnp
from jax.experimental import pallas as pl
from jax.experimental.pallas import tpu as pltpu


# ---------------------------------------------------------------------------
# Fused kernel: packed 2-layer MLP (gamma & beta paths) + per-channel modulation
# of one x tile.
# ---------------------------------------------------------------------------
def _affine_fused_kernel(y_ref, w1_ref, b1_ref, w2_ref, b2_ref, x_ref, o_ref):
    D = w2_ref.shape[1]

    # Layer 1, gamma & beta paths concatenated: (B, D) @ (D, 2D) -> (B, 2D).
    h = jnp.dot(y_ref[...], w1_ref[...], preferred_element_type=jnp.float32)
    h = jnp.maximum(h + b1_ref[...], 0.0)                    # ReLU, f32
    h = h.astype(w2_ref.dtype)

    # Layer 2 as two dense (D -> C) matmuls (no structural zeros).
    gamma = jnp.dot(h[:, :D], w2_ref[0],
                    preferred_element_type=jnp.float32) + b2_ref[0]   # (B, C)
    beta = jnp.dot(h[:, D:], w2_ref[1],
                   preferred_element_type=jnp.float32) + b2_ref[1]    # (B, C)

    # Per-channel modulation of the current x tile (pure VPU, lane-dense).
    o_ref[...] = (gamma[:, :, None] * x_ref[...] + beta[:, :, None]
                  ).astype(o_ref.dtype)


def _pick_hw_tile(B, C, HW, itemsize, target_bytes=2 << 20):
    """Largest 128-multiple HW tile such that one x tile stays under target.

    With in + out double-buffered that is <= 4*target + ~1.2 MiB of weights,
    comfortably inside every chip's default scoped-VMEM limit.
    """
    per_hw = B * C * itemsize
    if per_hw * HW <= target_bytes:
        return HW
    return min(HW, max(128, (target_bytes // per_hw) // 128 * 128))


@partial(jax.jit, donate_argnums=(1,), static_argnames=("hw_tile",))
def affine_forward(packed, x, y, *, hw_tile=None):
    """x: (B, C, H, W) NCHW (donated), y: (B, 512). Returns (B, C, H, W)."""
    B, C, H, W = x.shape
    D = y.shape[1]
    HW = H * W
    x_flat = x.reshape(B, C, HW)

    w1, b1, w2, b2 = packed["w1"], packed["b1"], packed["w2"], packed["b2"]
    D2 = w1.shape[1]                      # 2D

    if hw_tile is None:
        hw_tile = _pick_hw_tile(B, C, HW, x.dtype.itemsize)
    assert hw_tile == HW or hw_tile % 128 == 0
    num_tiles = pl.cdiv(HW, hw_tile)

    flops = num_tiles * (2 * B * D * D2 + 4 * B * D * C) + 2 * B * C * HW
    bytes_accessed = (
        y.size * 2                                   # y cast to bf16 below
        + w1.size * w1.dtype.itemsize + b1.size * b1.dtype.itemsize
        + w2.size * w2.dtype.itemsize + b2.size * b2.dtype.itemsize
        + 2 * x.size * x.dtype.itemsize)

    out = pl.pallas_call(
        _affine_fused_kernel,
        out_shape=jax.ShapeDtypeStruct((B, C, HW), x.dtype),
        grid=(num_tiles,),
        in_specs=[
            pl.BlockSpec((B, D), lambda i: (0, 0)),              # y  (resident)
            pl.BlockSpec((D, D2), lambda i: (0, 0)),             # W1 (resident)
            pl.BlockSpec((1, D2), lambda i: (0, 0)),             # b1 (resident)
            pl.BlockSpec((2, D, C), lambda i: (0, 0, 0)),        # W2 stacked
            pl.BlockSpec((2, 1, C), lambda i: (0, 0, 0)),        # b2 stacked
            pl.BlockSpec((B, C, hw_tile), lambda i: (0, 0, i)),  # x tile
        ],
        out_specs=pl.BlockSpec((B, C, hw_tile), lambda i: (0, 0, i)),
        input_output_aliases={5: 0},      # in-place: out reuses donated x
        compiler_params=pltpu.CompilerParams(
            dimension_semantics=("parallel",)),
        cost_estimate=pl.CostEstimate(
            flops=int(flops), transcendentals=0,
            bytes_accessed=int(bytes_accessed)),
    )(y.astype(w1.dtype), w1, b1, w2, b2, x_flat)
    return out.reshape(B, C, H, W)


# ---------------------------------------------------------------------------
# Parameter init (mirrors affine.__init__/_initialize) and packing.
# ---------------------------------------------------------------------------
def init_affine_params(num_features, key, hidden=512):
    """Weights stored as (in, out) so the kernel computes y @ W + b."""
    k1, k2, k3, k4 = jax.random.split(key, 4)
    scale = 1.0 / jnp.sqrt(hidden)
    return {
        # fc_gamma
        "g_w1": jax.random.uniform(k1, (hidden, hidden), jnp.float32, -scale, scale),
        "g_b1": jax.random.uniform(k2, (hidden,), jnp.float32, -scale, scale),
        "g_w2": jnp.zeros((hidden, num_features), jnp.float32),   # zeros_
        "g_b2": jnp.ones((num_features,), jnp.float32),           # ones_
        # fc_beta
        "b_w1": jax.random.uniform(k3, (hidden, hidden), jnp.float32, -scale, scale),
        "b_b1": jax.random.uniform(k4, (hidden,), jnp.float32, -scale, scale),
        "b_w2": jnp.zeros((hidden, num_features), jnp.float32),   # zeros_
        "b_b2": jnp.zeros((num_features,), jnp.float32),          # zeros_
    }


def pack_affine_params(params, weight_dtype=jnp.bfloat16):
    """Pack gamma/beta MLPs: W1 concat (D, 2D); W2 dense stack (2, D, C)."""
    D, C = params["g_w2"].shape
    w1 = jnp.concatenate([params["g_w1"], params["b_w1"]], axis=1)      # (D, 2D)
    b1 = jnp.concatenate([params["g_b1"], params["b_b1"]], axis=0)      # (2D,)
    w2 = jnp.stack([params["g_w2"], params["b_w2"]], axis=0)            # (2, D, C)
    b2 = jnp.stack([params["g_b2"], params["b_b2"]], axis=0)            # (2, C)
    return {
        "w1": w1.astype(weight_dtype),
        "b1": b1.reshape(1, 2 * D).astype(jnp.float32),
        "w2": w2.astype(weight_dtype),
        "b2": b2.reshape(2, 1, C).astype(jnp.float32),
    }


# Pure-JAX f32 reference matching the PyTorch module semantics.
def affine_reference(params, x, y):
    def mlp(w1, b1, w2, b2):
        h = jnp.maximum(y @ w1 + b1, 0.0)
        return h @ w2 + b2
    gamma = mlp(params["g_w1"], params["g_b1"], params["g_w2"], params["g_b2"])
    beta = mlp(params["b_w1"], params["b_b1"], params["b_w2"], params["b_b2"])
    return gamma[:, :, None, None] * x + beta[:, :, None, None]


# Reference with the SAME bf16 weight numerics as the kernel (tight gate).
def affine_matched_reference(packed, x, y):
    D = packed["w2"].shape[1]
    yb = y.astype(packed["w1"].dtype)
    h = jnp.dot(yb, packed["w1"], preferred_element_type=jnp.float32)
    h = jnp.maximum(h + packed["b1"], 0.0).astype(packed["w2"].dtype)
    gamma = jnp.dot(h[:, :D], packed["w2"][0],
                    preferred_element_type=jnp.float32) + packed["b2"][0, 0]
    beta = jnp.dot(h[:, D:], packed["w2"][1],
                   preferred_element_type=jnp.float32) + packed["b2"][1, 0]
    return gamma[:, :, None, None] * x + beta[:, :, None, None]


if __name__ == "__main__":
    B, C, H, W = 2, 64, 16, 16   # num_features = 64
    D = 512                      # fixed by the module: Linear(512, 512)

    key = jax.random.PRNGKey(0)
    kx, ky, kp, kw, kb, kx2, ky2 = jax.random.split(key, 7)

    x = jax.random.normal(kx, (B, C, H, W), jnp.float32)
    y = jax.random.normal(ky, (B, D), jnp.float32)

    params = init_affine_params(C, kp)
    # The module's init zeroes the second-layer weights (gamma==1, beta==0),
    # which would make the check trivial; randomize them to exercise the MLP.
    scale = 1.0 / jnp.sqrt(D)
    params["g_w2"] = jax.random.uniform(kw, (D, C), jnp.float32, -scale, scale)
    params["b_w2"] = jax.random.uniform(kb, (D, C), jnp.float32, -scale, scale)
    packed = pack_affine_params(params)

    # References first: x is donated into affine_forward and invalid afterwards.
    ref_f32 = jax.block_until_ready(affine_reference(params, x, y))
    ref_match = jax.block_until_ready(affine_matched_reference(packed, x, y))

    out = jax.block_until_ready(affine_forward(packed, x, y))
    assert out.shape == (B, C, H, W)
    assert out.dtype == jnp.float32
    # Tight gate vs. a reference using identical bf16-weight numerics.
    assert jnp.allclose(out, ref_match, atol=1e-3, rtol=1e-3), float(
        jnp.max(jnp.abs(out - ref_match)))
    # Loose gate vs. the f32 PyTorch-module semantics (bf16 weight drift).
    assert jnp.allclose(out, ref_f32, atol=5e-2, rtol=5e-2), float(
        jnp.max(jnp.abs(out - ref_f32)))

    # Second case: force HW tiling (grid=(4,)) to exercise the pipelined,
    # "parallel" multi-step path with the in-place alias.
    x2 = jax.random.normal(kx2, (B, C, 32, 32), jnp.float32)
    y2 = jax.random.normal(ky2, (B, D), jnp.float32)
    ref2 = jax.block_until_ready(affine_matched_reference(packed, x2, y2))
    out2 = jax.block_until_ready(affine_forward(packed, x2, y2, hw_tile=256))
    assert jnp.allclose(out2, ref2, atol=1e-3, rtol=1e-3), float(
        jnp.max(jnp.abs(out2 - ref2)))

    print("KERNEL_OK")
</pallas_src>

<mosaic_0001>
module attributes {stable_mosaic.version = 11 : i64} {
  func.func @_affine_fused_kernel(%arg0: i32, %arg1: memref<2x512xbf16, #tpu.memory_space<vmem>>, %arg2: memref<512x1024xbf16, #tpu.memory_space<vmem>>, %arg3: memref<1x1024xf32, #tpu.memory_space<vmem>>, %arg4: memref<2x512x64xbf16, #tpu.memory_space<vmem>>, %arg5: memref<2x1x64xf32, #tpu.memory_space<vmem>>, %arg6: memref<2x64x256xf32, #tpu.memory_space<vmem>>, %arg7: memref<2x64x256xf32, #tpu.memory_space<vmem>>) attributes {dimension_semantics = [#tpu.dimension_semantics<parallel>], iteration_bounds = array<i64: 1>, scalar_prefetch = 0 : i64, scratch_operands = 0 : i64, tpu.core_type = #tpu.core_type<tc>, window_params = [{pipeline_mode = #tpu.pipeline_mode<synchronous>, transform_indices = @transform_0, window_bounds = array<i64: 2, 512>}, {pipeline_mode = #tpu.pipeline_mode<synchronous>, transform_indices = @transform_1, window_bounds = array<i64: 512, 1024>}, {pipeline_mode = #tpu.pipeline_mode<synchronous>, transform_indices = @transform_2, window_bounds = array<i64: 1, 1024>}, {pipeline_mode = #tpu.pipeline_mode<synchronous>, transform_indices = @transform_3, window_bounds = array<i64: 2, 512, 64>}, {pipeline_mode = #tpu.pipeline_mode<synchronous>, transform_indices = @transform_4, window_bounds = array<i64: 2, 1, 64>}, {transform_indices = @transform_5, window_bounds = array<i64: 2, 64, 256>}, {transform_indices = @transform_6, window_bounds = array<i64: 2, 64, 256>}]} {
    %c0 = arith.constant 0 : index
    %c0_0 = arith.constant 0 : index
    %0 = vector.load %arg1[%c0, %c0_0] : memref<2x512xbf16, #tpu.memory_space<vmem>>, vector<2x512xbf16>
    %c0_1 = arith.constant 0 : index
    %c0_2 = arith.constant 0 : index
    %1 = vector.load %arg2[%c0_1, %c0_2] : memref<512x1024xbf16, #tpu.memory_space<vmem>>, vector<512x1024xbf16>
    %cst = arith.constant dense<0.000000e+00> : vector<2x1024xf32>
    %2 = tpu.matmul %0, %1, %cst {dimension_numbers = #tpu.dot_dimension_numbers<[1], [0], [0], [1], [0, 0, 1, 1], [], []>} : vector<2x512xbf16>, vector<512x1024xbf16>, vector<2x1024xf32> -> vector<2x1024xf32>
    %c0_3 = arith.constant 0 : index
    %c0_4 = arith.constant 0 : index
    %3 = vector.load %arg3[%c0_3, %c0_4] : memref<1x1024xf32, #tpu.memory_space<vmem>>, vector<1x1024xf32>
    %4 = vector.broadcast %3 : vector<1x1024xf32> to vector<2x1024xf32>
    %5 = arith.addf %2, %4 : vector<2x1024xf32>
    %cst_5 = arith.constant 0.000000e+00 : f32
    %6 = vector.broadcast %cst_5 : f32 to vector<2x1024xf32>
    %7 = arith.maximumf %5, %6 : vector<2x1024xf32>
    %8 = arith.truncf %7 : vector<2x1024xf32> to vector<2x1024xbf16>
    %9 = vector.extract_strided_slice %8 {offsets = [0, 0], sizes = [2, 512], strides = [1, 1]} : vector<2x1024xbf16> to vector<2x512xbf16>
    %c0_6 = arith.constant 0 : index
    %c0_7 = arith.constant 0 : index
    %c0_8 = arith.constant 0 : index
    %10 = vector.load %arg4[%c0_6, %c0_7, %c0_8] : memref<2x512x64xbf16, #tpu.memory_space<vmem>>, vector<1x512x64xbf16>
    %11 = vector.shape_cast %10 : vector<1x512x64xbf16> to vector<512x64xbf16>
    %cst_9 = arith.constant dense<0.000000e+00> : vector<2x64xf32>
    %12 = tpu.matmul %9, %11, %cst_9 {dimension_numbers = #tpu.dot_dimension_numbers<[1], [0], [0], [1], [0, 0, 1, 1], [], []>} : vector<2x512xbf16>, vector<512x64xbf16>, vector<2x64xf32> -> vector<2x64xf32>
    %c0_10 = arith.constant 0 : index
    %c0_11 = arith.constant 0 : index
    %c0_12 = arith.constant 0 : index
    %13 = vector.load %arg5[%c0_10, %c0_11, %c0_12] : memref<2x1x64xf32, #tpu.memory_space<vmem>>, vector<1x1x64xf32>
    %14 = vector.shape_cast %13 : vector<1x1x64xf32> to vector<1x64xf32>
    %15 = vector.broadcast %14 : vector<1x64xf32> to vector<2x64xf32>
    %16 = arith.addf %12, %15 : vector<2x64xf32>
    %17 = vector.extract_strided_slice %8 {offsets = [0, 512], sizes = [2, 512], strides = [1, 1]} : vector<2x1024xbf16> to vector<2x512xbf16>
    %c1 = arith.constant 1 : index
    %c0_13 = arith.constant 0 : index
    %c0_14 = arith.constant 0 : index
    %18 = vector.load %arg4[%c1, %c0_13, %c0_14] : memref<2x512x64xbf16, #tpu.memory_space<vmem>>, vector<1x512x64xbf16>
    %19 = vector.shape_cast %18 : vector<1x512x64xbf16> to vector<512x64xbf16>
    %cst_15 = arith.constant dense<0.000000e+00> : vector<2x64xf32>
    %20 = tpu.matmul %17, %19, %cst_15 {dimension_numbers = #tpu.dot_dimension_numbers<[1], [0], [0], [1], [0, 0, 1, 1], [], []>} : vector<2x512xbf16>, vector<512x64xbf16>, vector<2x64xf32> -> vector<2x64xf32>
    %c1_16 = arith.constant 1 : index
    %c0_17 = arith.constant 0 : index
    %c0_18 = arith.constant 0 : index
    %21 = vector.load %arg5[%c1_16, %c0_17, %c0_18] : memref<2x1x64xf32, #tpu.memory_space<vmem>>, vector<1x1x64xf32>
    %22 = vector.shape_cast %21 : vector<1x1x64xf32> to vector<1x64xf32>
    %23 = vector.broadcast %22 : vector<1x64xf32> to vector<2x64xf32>
    %24 = arith.addf %20, %23 : vector<2x64xf32>
    %25 = vector.shape_cast %16 : vector<2x64xf32> to vector<2x64x1xf32>
    %c0_19 = arith.constant 0 : index
    %c0_20 = arith.constant 0 : index
    %c0_21 = arith.constant 0 : index
    %26 = vector.load %arg6[%c0_19, %c0_20, %c0_21] : memref<2x64x256xf32, #tpu.memory_space<vmem>>, vector<2x64x256xf32>
    %27 = vector.broadcast %25 : vector<2x64x1xf32> to vector<2x64x256xf32>
    %28 = arith.mulf %27, %26 : vector<2x64x256xf32>
    %29 = vector.shape_cast %24 : vector<2x64xf32> to vector<2x64x1xf32>
    %30 = vector.broadcast %29 : vector<2x64x1xf32> to vector<2x64x256xf32>
    %31 = arith.addf %28, %30 : vector<2x64x256xf32>
    %c0_22 = arith.constant 0 : index
    %c0_23 = arith.constant 0 : index
    %c0_24 = arith.constant 0 : index
    %32 = vector.load %arg7[%c0_22, %c0_23, %c0_24] : memref<2x64x256xf32, #tpu.memory_space<vmem>>, vector<2x64x256xf32>
    tpu.vector_store %arg7[%c0_22, %c0_23, %c0_24], %31 {strides = array<i32>} : memref<2x64x256xf32, #tpu.memory_space<vmem>>, vector<2x64x256xf32>,
    return
  }
  func.func @transform_0(%arg0: i32) -> (i32, i32) {
    %c0_i32 = arith.constant 0 : i32
    %c0_i32_0 = arith.constant 0 : i32
    %c0_i32_1 = arith.constant 0 : i32
    return %c0_i32, %c0_i32_0 : i32, i32
  }
  func.func @transform_1(%arg0: i32) -> (i32, i32) {
    %c0_i32 = arith.constant 0 : i32
    %c0_i32_0 = arith.constant 0 : i32
    %c0_i32_1 = arith.constant 0 : i32
    return %c0_i32, %c0_i32_0 : i32, i32
  }
  func.func @transform_2(%arg0: i32) -> (i32, i32) {
    %c0_i32 = arith.constant 0 : i32
    %c0_i32_0 = arith.constant 0 : i32
    %c0_i32_1 = arith.constant 0 : i32
    return %c0_i32, %c0_i32_0 : i32, i32
  }
  func.func @transform_3(%arg0: i32) -> (i32, i32, i32) {
    %c0_i32 = arith.constant 0 : i32
    %c0_i32_0 = arith.constant 0 : i32
    %c0_i32_1 = arith.constant 0 : i32
    %c0_i32_2 = arith.constant 0 : i32
    return %c0_i32, %c0_i32_0, %c0_i32_1 : i32, i32, i32
  }
  func.func @transform_4(%arg0: i32) -> (i32, i32, i32) {
    %c0_i32 = arith.constant 0 : i32
    %c0_i32_0 = arith.constant 0 : i32
    %c0_i32_1 = arith.constant 0 : i32
    %c0_i32_2 = arith.constant 0 : i32
    return %c0_i32, %c0_i32_0, %c0_i32_1 : i32, i32, i32
  }
  func.func @transform_5(%arg0: i32) -> (i32, i32, i32) {
    %c0_i32 = arith.constant 0 : i32
    %c0_i32_0 = arith.constant 0 : i32
    %c0_i32_1 = arith.constant 0 : i32
    return %c0_i32, %c0_i32_0, %arg0 : i32, i32, i32
  }
  func.func @transform_6(%arg0: i32) -> (i32, i32, i32) {
    %c0_i32 = arith.constant 0 : i32
    %c0_i32_0 = arith.constant 0 : i32
    %c0_i32_1 = arith.constant 0 : i32
    return %c0_i32, %c0_i32_0, %arg0 : i32, i32, i32
  }
}

</mosaic_0001>

<llo_original>
// kernel: affine_forward.1
$region0: #{affine_forward.1}
  #allocation0 [shape = 'u32[]', space=smem, size = 0x4, offset = 0x4, fixed_abs, tag = 'smem constant byte address 0x4 - core index']
  #allocation1 [shape = 'u32[144,128]{1,0:T(1,128)}', space=vmem, size = 0x12000, scoped, tag = 'internal scratch']
  %s0 = inlined_call_operand.vmem [shape: bf16[2,512], index: 0, kind: input, shape index: {}]
  %s1 = inlined_call_operand.hbm [shape: bf16[512,1024], index: 1, kind: input, shape index: {}]
  %s2 = inlined_call_operand.vmem [shape: f32[1,1024], index: 2, kind: input, shape index: {}]
  %s3 = inlined_call_operand.vmem [shape: bf16[2,512,64], index: 3, kind: input, shape index: {}]
  %s4 = inlined_call_operand.vmem [shape: f32[2,1,64], index: 4, kind: input, shape index: {}]
  %s5 = inlined_call_operand.vmem [shape: f32[2,64,256], index: 5, kind: input, shape index: {}, may-alias: {5,6}]
  %s6 = inlined_call_operand.vmem [shape: f32[2,64,256], index: 6, kind: output, shape index: {}, may-alias: {5,6}]
  %s7 = sld [smem:[#allocation0]]
  $region38: #{affine_forward.1} parent=0
    _
  %s9 = ssub.s32 1, %s7
  %s10 = scalar_select 0, %s9, %s7
  $region1: #{affine_forward.1} parent=0
    #allocation2 [shape = 'u8[1048576]{0}', space=vmem, size = 0x100000, scoped, tag = 'input window, operand 1, single buffered']
    #allocation3 [shape = 's32[1]{0}', space=sflag, size = 0x4, scoped, tag = 'scoped memory for affine_forward.1']
    %11 = vsyncpa [#allocation3], 0
    // Predicated region
    $region2: #{affine_forward.1} parent=1 // pred_check
      _
    $region3: #{affine_forward.1} parent=1 // pred_check_branch
      %13 = sbr.rel (0) target = $region5
    $region4: #{affine_forward.1} parent=1 // pred_region
      _
    $region5: #{affine_forward.1} parent=1 // pred_fallthru
      _
    // Predicated region
    $region6: #{affine_forward.1} parent=1 // pred_check
      _
    $region7: #{affine_forward.1} parent=1 // pred_check_branch
      %15 = sbr.rel (0) target = $region9
    $region8: #{affine_forward.1} parent=1 // pred_region
      %s17 = ssub.s32 32768, 32768
      %18 = vsyncadd [#allocation3], %s17
      %s19 = sshll.u32 [#allocation2], 4
      %s20 = int_to_ptr.vmem [resolvable:$true] %s19
      %25 = dma.hbm_to_vmem [thread:$0]  %s1, 32768, %s20, [#allocation3], 512, 512, 32
    $region9: #{affine_forward.1} parent=1 // pred_fallthru
      _
    // Predicated region
    $region10: #{affine_forward.1} parent=1 // pred_check
      _
    $region11: #{affine_forward.1} parent=1 // pred_check_branch
      %27 = sbr.rel (0) target = $region13
    $region12: #{affine_forward.1} parent=1 // pred_region
      _
    $region13: #{affine_forward.1} parent=1 // pred_fallthru
      _
    // Predicated region
    $region14: #{affine_forward.1} parent=1 // pred_check
      _
    $region15: #{affine_forward.1} parent=1 // pred_check_branch
      %29 = sbr.rel (0) target = $region17
    $region16: #{affine_forward.1} parent=1 // pred_region
      _
    $region17: #{affine_forward.1} parent=1 // pred_fallthru
      _
    // Predicated region
    $region18: #{affine_forward.1} parent=1 // pred_check
      _
    $region19: #{affine_forward.1} parent=1 // pred_check_branch
      %31 = sbr.rel (0) target = $region21
    $region20: #{affine_forward.1} parent=1 // pred_region
      _
    $region21: #{affine_forward.1} parent=1 // pred_fallthru
      _
    // Predicated region
    $region22: #{affine_forward.1} parent=1 // pred_check
      _
    $region23: #{affine_forward.1} parent=1 // pred_check_branch
      %33 = sbr.rel (0) target = $region25
    $region24: #{affine_forward.1} parent=1 // pred_region
      _
    $region25: #{affine_forward.1} parent=1 // pred_fallthru
      _
    // Predicated region
    $region26: #{affine_forward.1} parent=1 // pred_check
      _
    $region27: #{affine_forward.1} parent=1 // pred_check_branch
      %35 = sbr.rel (0) target = $region29
    $region28: #{affine_forward.1} parent=1 // pred_region
      %36 = dma.done [#allocation3], 32768
    $region29: #{affine_forward.1} parent=1 // pred_fallthru
      _
    %v38 = vld [vmem:[%s0] sm:$0xf]
    %v39 = vld [vmem:[#allocation2] sm:$0xff]
    %v40 = vld [vmem:[#allocation2 + $0x8] sm:$0xff]
    %v41 = vld [vmem:[#allocation2 + $0x10] sm:$0xff]
    %v42 = vld [vmem:[#allocation2 + $0x18] sm:$0xff]
    %v43 = vld [vmem:[#allocation2 + $0x20] sm:$0xff]
    %v44 = vld [vmem:[#allocation2 + $0x28] sm:$0xff]
    %v45 = vld [vmem:[#allocation2 + $0x30] sm:$0xff]
    %v46 = vld [vmem:[#allocation2 + $0x38] sm:$0xff]
    %v47 = vld [vmem:[#allocation2 + $0x40] sm:$0xff]
    %v48 = vld [vmem:[#allocation2 + $0x48] sm:$0xff]
    %v49 = vld [vmem:[#allocation2 + $0x50] sm:$0xff]
    %v50 = vld [vmem:[#allocation2 + $0x58] sm:$0xff]
    %v51 = vld [vmem:[#allocation2 + $0x60] sm:$0xff]
    %v52 = vld [vmem:[#allocation2 + $0x68] sm:$0xff]
    %v53 = vld [vmem:[#allocation2 + $0x70] sm:$0xff]
    %v54 = vld [vmem:[#allocation2 + $0x78] sm:$0xff]
    %v55 = vld [vmem:[#allocation2 + $0x80] sm:$0xff]
    %v56 = vld [vmem:[#allocation2 + $0x88] sm:$0xff]
    %v57 = vld [vmem:[#allocation2 + $0x90] sm:$0xff]
    %v58 = vld [vmem:[#allocation2 + $0x98] sm:$0xff]
    %v59 = vld [vmem:[#allocation2 + $0xa0] sm:$0xff]
    %v60 = vld [vmem:[#allocation2 + $0xa8] sm:$0xff]
    %v61 = vld [vmem:[#allocation2 + $0xb0] sm:$0xff]
    %v62 = vld [vmem:[#allocation2 + $0xb8] sm:$0xff]
    %v63 = vld [vmem:[#allocation2 + $0xc0] sm:$0xff]
    %v64 = vld [vmem:[#allocation2 + $0xc8] sm:$0xff]
    %v65 = vld [vmem:[#allocation2 + $0xd0] sm:$0xff]
    %v66 = vld [vmem:[#allocation2 + $0xd8] sm:$0xff]
    %v67 = vld [vmem:[#allocation2 + $0xe0] sm:$0xff]
    %v68 = vld [vmem:[#allocation2 + $0xe8] sm:$0xff]
    %v69 = vld [vmem:[#allocation2 + $0xf0] sm:$0xff]
    %v70 = vld [vmem:[#allocation2 + $0xf8] sm:$0xff]
    %v71 = vld [vmem:[#allocation2 + $0x100] sm:$0xff]
    %v72 = vld [vmem:[#allocation2 + $0x108] sm:$0xff]
    %v73 = vld [vmem:[#allocation2 + $0x110] sm:$0xff]
    %v74 = vld [vmem:[#allocation2 + $0x118] sm:$0xff]
    %v75 = vld [vmem:[#allocation2 + $0x120] sm:$0xff]
    %v76 = vld [vmem:[#allocation2 + $0x128] sm:$0xff]
    %v77 = vld [vmem:[#allocation2 + $0x130] sm:$0xff]
    %v78 = vld [vmem:[#allocation2 + $0x138] sm:$0xff]
    %v79 = vld [vmem:[#allocation2 + $0x140] sm:$0xff]
    %v80 = vld [vmem:[#allocation2 + $0x148] sm:$0xff]
    %v81 = vld [vmem:[#allocation2 + $0x150] sm:$0xff]
    %v82 = vld [vmem:[#allocation2 + $0x158] sm:$0xff]
    %v83 = vld [vmem:[#allocation2 + $0x160] sm:$0xff]
    %v84 = vld [vmem:[#allocation2 + $0x168] sm:$0xff]
    %v85 = vld [vmem:[#allocation2 + $0x170] sm:$0xff]
    %v86 = vld [vmem:[#allocation2 + $0x178] sm:$0xff]
    %v87 = vld [vmem:[#allocation2 + $0x180] sm:$0xff]
    %v88 = vld [vmem:[#allocation2 + $0x188] sm:$0xff]
    %v89 = vld [vmem:[#allocation2 + $0x190] sm:$0xff]
    %v90 = vld [vmem:[#allocation2 + $0x198] sm:$0xff]
    %v91 = vld [vmem:[#allocation2 + $0x1a0] sm:$0xff]
    %v92 = vld [vmem:[#allocation2 + $0x1a8] sm:$0xff]
    %v93 = vld [vmem:[#allocation2 + $0x1b0] sm:$0xff]
    %v94 = vld [vmem:[#allocation2 + $0x1b8] sm:$0xff]
    %v95 = vld [vmem:[#allocation2 + $0x1c0] sm:$0xff]
    %v96 = vld [vmem:[#allocation2 + $0x1c8] sm:$0xff]
    %v97 = vld [vmem:[#allocation2 + $0x1d0] sm:$0xff]
    %v98 = vld [vmem:[#allocation2 + $0x1d8] sm:$0xff]
    %v99 = vld [vmem:[#allocation2 + $0x1e0] sm:$0xff]
    %v100 = vld [vmem:[#allocation2 + $0x1e8] sm:$0xff]
    %v101 = vld [vmem:[#allocation2 + $0x1f0] sm:$0xff]
    %v102 = vld [vmem:[#allocation2 + $0x1f8] sm:$0xff]
    %v103 = vld [vmem:[#allocation2 + $0x200] sm:$0xff]
    %v104 = vld [vmem:[#allocation2 + $0x208] sm:$0xff]
    %v105 = vld [vmem:[#allocation2 + $0x210] sm:$0xff]
    %v106 = vld [vmem:[#allocation2 + $0x218] sm:$0xff]
    %v107 = vld [vmem:[#allocation2 + $0x220] sm:$0xff]
    %v108 = vld [vmem:[#allocation2 + $0x228] sm:$0xff]
    %v109 = vld [vmem:[#allocation2 + $0x230] sm:$0xff]
    %v110 = vld [vmem:[#allocation2 + $0x238] sm:$0xff]
    %v111 = vld [vmem:[#allocation2 + $0x240] sm:$0xff]
    %v112 = vld [vmem:[#allocation2 + $0x248] sm:$0xff]
    %v113 = vld [vmem:[#allocation2 + $0x250] sm:$0xff]
    %v114 = vld [vmem:[#allocation2 + $0x258] sm:$0xff]
    %v115 = vld [vmem:[#allocation2 + $0x260] sm:$0xff]
    %v116 = vld [vmem:[#allocation2 + $0x268] sm:$0xff]
    %v117 = vld [vmem:[#allocation2 + $0x270] sm:$0xff]
    %v118 = vld [vmem:[#allocation2 + $0x278] sm:$0xff]
    %v119 = vld [vmem:[#allocation2 + $0x280] sm:$0xff]
    %v120 = vld [vmem:[#allocation2 + $0x288] sm:$0xff]
    %v121 = vld [vmem:[#allocation2 + $0x290] sm:$0xff]
    %v122 = vld [vmem:[#allocation2 + $0x298] sm:$0xff]
    %v123 = vld [vmem:[#allocation2 + $0x2a0] sm:$0xff]
    %v124 = vld [vmem:[#allocation2 + $0x2a8] sm:$0xff]
    %v125 = vld [vmem:[#allocation2 + $0x2b0] sm:$0xff]
    %v126 = vld [vmem:[#allocation2 + $0x2b8] sm:$0xff]
    %v127 = vld [vmem:[#allocation2 + $0x2c0] sm:$0xff]
    %v128 = vld [vmem:[#allocation2 + $0x2c8] sm:$0xff]
    %v129 = vld [vmem:[#allocation2 + $0x2d0] sm:$0xff]
    %v130 = vld [vmem:[#allocation2 + $0x2d8] sm:$0xff]
    %v131 = vld [vmem:[#allocation2 + $0x2e0] sm:$0xff]
    %v132 = vld [vmem:[#allocation2 + $0x2e8] sm:$0xff]
    %v133 = vld [vmem:[#allocation2 + $0x2f0] sm:$0xff]
    %v134 = vld [vmem:[#allocation2 + $0x2f8] sm:$0xff]
    %v135 = vld [vmem:[#allocation2 + $0x300] sm:$0xff]
    %v136 = vld [vmem:[#allocation2 + $0x308] sm:$0xff]
    %v137 = vld [vmem:[#allocation2 + $0x310] sm:$0xff]
    %v138 = vld [vmem:[#allocation2 + $0x318] sm:$0xff]
    %v139 = vld [vmem:[#allocation2 + $0x320] sm:$0xff]
    %v140 = vld [vmem:[#allocation2 + $0x328] sm:$0xff]
    %v141 = vld [vmem:[#allocation2 + $0x330] sm:$0xff]
    %v142 = vld [vmem:[#allocation2 + $0x338] sm:$0xff]
    %v143 = vld [vmem:[#allocation2 + $0x340] sm:$0xff]
    %v144 = vld [vmem:[#allocation2 + $0x348] sm:$0xff]
    %v145 = vld [vmem:[#allocation2 + $0x350] sm:$0xff]
    %v146 = vld [vmem:[#allocation2 + $0x358] sm:$0xff]
    %v147 = vld [vmem:[#allocation2 + $0x360] sm:$0xff]
    %v148 = vld [vmem:[#allocation2 + $0x368] sm:$0xff]
    %v149 = vld [vmem:[#allocation2 + $0x370] sm:$0xff]
    %v150 = vld [vmem:[#allocation2 + $0x378] sm:$0xff]
    %v151 = vld [vmem:[#allocation2 + $0x380] sm:$0xff]
    %v152 = vld [vmem:[#allocation2 + $0x388] sm:$0xff]
    %v153 = vld [vmem:[#allocation2 + $0x390] sm:$0xff]
    %v154 = vld [vmem:[#allocation2 + $0x398] sm:$0xff]
    %v155 = vld [vmem:[#allocation2 + $0x3a0] sm:$0xff]
    %v156 = vld [vmem:[#allocation2 + $0x3a8] sm:$0xff]
    %v157 = vld [vmem:[#allocation2 + $0x3b0] sm:$0xff]
    %v158 = vld [vmem:[#allocation2 + $0x3b8] sm:$0xff]
    %v159 = vld [vmem:[#allocation2 + $0x3c0] sm:$0xff]
    %v160 = vld [vmem:[#allocation2 + $0x3c8] sm:$0xff]
    %v161 = vld [vmem:[#allocation2 + $0x3d0] sm:$0xff]
    %v162 = vld [vmem:[#allocation2 + $0x3d8] sm:$0xff]
    %v163 = vld [vmem:[#allocation2 + $0x3e0] sm:$0xff]
    %v164 = vld [vmem:[#allocation2 + $0x3e8] sm:$0xff]
    %v165 = vld [vmem:[#allocation2 + $0x3f0] sm:$0xff]
    %v166 = vld [vmem:[#allocation2 + $0x3f8] sm:$0xff]
    %v167 = vld [vmem:[#allocation2 + $0x400] sm:$0xff]
    %v168 = vld [vmem:[#allocation2 + $0x408] sm:$0xff]
    %v169 = vld [vmem:[#allocation2 + $0x410] sm:$0xff]
    %v170 = vld [vmem:[#allocation2 + $0x418] sm:$0xff]
    %v171 = vld [vmem:[#allocation2 + $0x420] sm:$0xff]
    %v172 = vld [vmem:[#allocation2 + $0x428] sm:$0xff]
    %v173 = vld [vmem:[#allocation2 + $0x430] sm:$0xff]
    %v174 = vld [vmem:[#allocation2 + $0x438] sm:$0xff]
    %v175 = vld [vmem:[#allocation2 + $0x440] sm:$0xff]
    %v176 = vld [vmem:[#allocation2 + $0x448] sm:$0xff]
    %v177 = vld [vmem:[#allocation2 + $0x450] sm:$0xff]
    %v178 = vld [vmem:[#allocation2 + $0x458] sm:$0xff]
    %v179 = vld [vmem:[#allocation2 + $0x460] sm:$0xff]
    %v180 = vld [vmem:[#allocation2 + $0x468] sm:$0xff]
    %v181 = vld [vmem:[#allocation2 + $0x470] sm:$0xff]
    %v182 = vld [vmem:[#allocation2 + $0x478] sm:$0xff]
    %v183 = vld [vmem:[#allocation2 + $0x480] sm:$0xff]
    %v184 = vld [vmem:[#allocation2 + $0x488] sm:$0xff]
    %v185 = vld [vmem:[#allocation2 + $0x490] sm:$0xff]
    %v186 = vld [vmem:[#allocation2 + $0x498] sm:$0xff]
    %v187 = vld [vmem:[#allocation2 + $0x4a0] sm:$0xff]
    %v188 = vld [vmem:[#allocation2 + $0x4a8] sm:$0xff]
    %v189 = vld [vmem:[#allocation2 + $0x4b0] sm:$0xff]
    %v190 = vld [vmem:[#allocation2 + $0x4b8] sm:$0xff]
    %v191 = vld [vmem:[#allocation2 + $0x4c0] sm:$0xff]
    %v192 = vld [vmem:[#allocation2 + $0x4c8] sm:$0xff]
    %v193 = vld [vmem:[#allocation2 + $0x4d0] sm:$0xff]
    %v194 = vld [vmem:[#allocation2 + $0x4d8] sm:$0xff]
    %v195 = vld [vmem:[#allocation2 + $0x4e0] sm:$0xff]
    %v196 = vld [vmem:[#allocation2 + $0x4e8] sm:$0xff]
    %v197 = vld [vmem:[#allocation2 + $0x4f0] sm:$0xff]
    %v198 = vld [vmem:[#allocation2 + $0x4f8] sm:$0xff]
    %v199 = vld [vmem:[#allocation2 + $0x500] sm:$0xff]
    %v200 = vld [vmem:[#allocation2 + $0x508] sm:$0xff]
    %v201 = vld [vmem:[#allocation2 + $0x510] sm:$0xff]
    %v202 = vld [vmem:[#allocation2 + $0x518] sm:$0xff]
    %v203 = vld [vmem:[#allocation2 + $0x520] sm:$0xff]
    %v204 = vld [vmem:[#allocation2 + $0x528] sm:$0xff]
    %v205 = vld [vmem:[#allocation2 + $0x530] sm:$0xff]
    %v206 = vld [vmem:[#allocation2 + $0x538] sm:$0xff]
    %v207 = vld [vmem:[#allocation2 + $0x540] sm:$0xff]
    %v208 = vld [vmem:[#allocation2 + $0x548] sm:$0xff]
    %v209 = vld [vmem:[#allocation2 + $0x550] sm:$0xff]
    %v210 = vld [vmem:[#allocation2 + $0x558] sm:$0xff]
    %v211 = vld [vmem:[#allocation2 + $0x560] sm:$0xff]
    %v212 = vld [vmem:[#allocation2 + $0x568] sm:$0xff]
    %v213 = vld [vmem:[#allocation2 + $0x570] sm:$0xff]
    %v214 = vld [vmem:[#allocation2 + $0x578] sm:$0xff]
    %v215 = vld [vmem:[#allocation2 + $0x580] sm:$0xff]
    %v216 = vld [vmem:[#allocation2 + $0x588] sm:$0xff]
    %v217 = vld [vmem:[#allocation2 + $0x590] sm:$0xff]
    %v218 = vld [vmem:[#allocation2 + $0x598] sm:$0xff]
    %v219 = vld [vmem:[#allocation2 + $0x5a0] sm:$0xff]
    %v220 = vld [vmem:[#allocation2 + $0x5a8] sm:$0xff]
    %v221 = vld [vmem:[#allocation2 + $0x5b0] sm:$0xff]
    %v222 = vld [vmem:[#allocation2 + $0x5b8] sm:$0xff]
    %v223 = vld [vmem:[#allocation2 + $0x5c0] sm:$0xff]
    %v224 = vld [vmem:[#allocation2 + $0x5c8] sm:$0xff]
    %v225 = vld [vmem:[#allocation2 + $0x5d0] sm:$0xff]
    %v226 = vld [vmem:[#allocation2 + $0x5d8] sm:$0xff]
    %v227 = vld [vmem:[#allocation2 + $0x5e0] sm:$0xff]
    %v228 = vld [vmem:[#allocation2 + $0x5e8] sm:$0xff]
    %v229 = vld [vmem:[#allocation2 + $0x5f0] sm:$0xff]
    %v230 = vld [vmem:[#allocation2 + $0x5f8] sm:$0xff]
    %v231 = vld [vmem:[#allocation2 + $0x600] sm:$0xff]
    %v232 = vld [vmem:[#allocation2 + $0x608] sm:$0xff]
    %v233 = vld [vmem:[#allocation2 + $0x610] sm:$0xff]
    %v234 = vld [vmem:[#allocation2 + $0x618] sm:$0xff]
    %v235 = vld [vmem:[#allocation2 + $0x620] sm:$0xff]
    %v236 = vld [vmem:[#allocation2 + $0x628] sm:$0xff]
    %v237 = vld [vmem:[#allocation2 + $0x630] sm:$0xff]
    %v238 = vld [vmem:[#allocation2 + $0x638] sm:$0xff]
    %v239 = vld [vmem:[#allocation2 + $0x640] sm:$0xff]
    %v240 = vld [vmem:[#allocation2 + $0x648] sm:$0xff]
    %v241 = vld [vmem:[#allocation2 + $0x650] sm:$0xff]
    %v242 = vld [vmem:[#allocation2 + $0x658] sm:$0xff]
    %v243 = vld [vmem:[#allocation2 + $0x660] sm:$0xff]
    %v244 = vld [vmem:[#allocation2 + $0x668] sm:$0xff]
    %v245 = vld [vmem:[#allocation2 + $0x670] sm:$0xff]
    %v246 = vld [vmem:[#allocation2 + $0x678] sm:$0xff]
    %v247 = vld [vmem:[#allocation2 + $0x680] sm:$0xff]
    %v248 = vld [vmem:[#allocation2 + $0x688] sm:$0xff]
    %v249 = vld [vmem:[#allocation2 + $0x690] sm:$0xff]
    %v250 = vld [vmem:[#allocation2 + $0x698] sm:$0xff]
    %v251 = vld [vmem:[#allocation2 + $0x6a0] sm:$0xff]
    %v252 = vld [vmem:[#allocation2 + $0x6a8] sm:$0xff]
    %v253 = vld [vmem:[#allocation2 + $0x6b0] sm:$0xff]
    %v254 = vld [vmem:[#allocation2 + $0x6b8] sm:$0xff]
    %v255 = vld [vmem:[#allocation2 + $0x6c0] sm:$0xff]
    %v256 = vld [vmem:[#allocation2 + $0x6c8] sm:$0xff]
    %v257 = vld [vmem:[#allocation2 + $0x6d0] sm:$0xff]
    %v258 = vld [vmem:[#allocation2 + $0x6d8] sm:$0xff]
    %v259 = vld [vmem:[#allocation2 + $0x6e0] sm:$0xff]
    %v260 = vld [vmem:[#allocation2 + $0x6e8] sm:$0xff]
    %v261 = vld [vmem:[#allocation2 + $0x6f0] sm:$0xff]
    %v262 = vld [vmem:[#allocation2 + $0x6f8] sm:$0xff]
    %v263 = vld [vmem:[#allocation2 + $0x700] sm:$0xff]
    %v264 = vld [vmem:[#allocation2 + $0x708] sm:$0xff]
    %v265 = vld [vmem:[#allocation2 + $0x710] sm:$0xff]
    %v266 = vld [vmem:[#allocation2 + $0x718] sm:$0xff]
    %v267 = vld [vmem:[#allocation2 + $0x720] sm:$0xff]
    %v268 = vld [vmem:[#allocation2 + $0x728] sm:$0xff]
    %v269 = vld [vmem:[#allocation2 + $0x730] sm:$0xff]
    %v270 = vld [vmem:[#allocation2 + $0x738] sm:$0xff]
    %v271 = vld [vmem:[#allocation2 + $0x740] sm:$0xff]
    %v272 = vld [vmem:[#allocation2 + $0x748] sm:$0xff]
    %v273 = vld [vmem:[#allocation2 + $0x750] sm:$0xff]
    %v274 = vld [vmem:[#allocation2 + $0x758] sm:$0xff]
    %v275 = vld [vmem:[#allocation2 + $0x760] sm:$0xff]
    %v276 = vld [vmem:[#allocation2 + $0x768] sm:$0xff]
    %v277 = vld [vmem:[#allocation2 + $0x770] sm:$0xff]
    %v278 = vld [vmem:[#allocation2 + $0x778] sm:$0xff]
    %v279 = vld [vmem:[#allocation2 + $0x780] sm:$0xff]
    %v280 = vld [vmem:[#allocation2 + $0x788] sm:$0xff]
    %v281 = vld [vmem:[#allocation2 + $0x790] sm:$0xff]
    %v282 = vld [vmem:[#allocation2 + $0x798] sm:$0xff]
    %v283 = vld [vmem:[#allocation2 + $0x7a0] sm:$0xff]
    %v284 = vld [vmem:[#allocation2 + $0x7a8] sm:$0xff]
    %v285 = vld [vmem:[#allocation2 + $0x7b0] sm:$0xff]
    %v286 = vld [vmem:[#allocation2 + $0x7b8] sm:$0xff]
    %v287 = vld [vmem:[#allocation2 + $0x7c0] sm:$0xff]
    %v288 = vld [vmem:[#allocation2 + $0x7c8] sm:$0xff]
    %v289 = vld [vmem:[#allocation2 + $0x7d0] sm:$0xff]
    %v290 = vld [vmem:[#allocation2 + $0x7d8] sm:$0xff]
    %v291 = vld [vmem:[#allocation2 + $0x7e0] sm:$0xff]
    %v292 = vld [vmem:[#allocation2 + $0x7e8] sm:$0xff]
    %v293 = vld [vmem:[#allocation2 + $0x7f0] sm:$0xff]
    %v294 = vld [vmem:[#allocation2 + $0x7f8] sm:$0xff]
    %v295 = vld [vmem:[%s2] sm:$0xff]
    %v297 = vlaneseq
    %v298 = vshrl.u32 %v297, 7
    %v299 = vsub.s32 0, %v298
    %v300 = vrot.slane %v295, %v299
    %v301 = vlaneseq
    %v302 = vshrl.u32 %v301, 7
    %v303 = vsub.s32 1, %v302
    %v304 = vrot.slane %v295, %v303
    %v305 = vlaneseq
    %v306 = vshrl.u32 %v305, 7
    %v307 = vsub.s32 2, %v306
    %v308 = vrot.slane %v295, %v307
    %v309 = vlaneseq
    %v310 = vshrl.u32 %v309, 7
    %v311 = vsub.s32 3, %v310
    %v312 = vrot.slane %v295, %v311
    %v313 = vlaneseq
    %v314 = vshrl.u32 %v313, 7
    %v315 = vsub.s32 4, %v314
    %v316 = vrot.slane %v295, %v315
    %v317 = vlaneseq
    %v318 = vshrl.u32 %v317, 7
    %v319 = vsub.s32 5, %v318
    %v320 = vrot.slane %v295, %v319
    %v321 = vlaneseq
    %v322 = vshrl.u32 %v321, 7
    %v323 = vsub.s32 6, %v322
    %v324 = vrot.slane %v295, %v323
    %v325 = vlaneseq
    %v326 = vshrl.u32 %v325, 7
    %v327 = vsub.s32 7, %v326
    %v328 = vrot.slane %v295, %v327
    %v339 = vunpack.c.l.s4 1966171168
    %v340 = vunpack.c.0.s8 %v339
    %v341 = vlaneseq
    %v342 = vshrl.u32 %v341, 7
    %v343 = vsub.s32 %v340, %v342
    %v344 = vrot.slane %v38, %v343
    %v345 = vcombine.high %v344, %v344
    %v347 = vunpack.c.l.s4 1966171168
    %v348 = vunpack.c.0.s8 %v347
    %v349 = vlaneseq
    %v350 = vshrl.u32 %v349, 7
    %v351 = vsub.s32 %v348, %v350
    %v352 = vrot.slane %v344, %v351
    %v354 = vunpack.c.l.s4 1966171168
    %v355 = vunpack.c.0.s8 %v354
    %v356 = vlaneseq
    %v357 = vshrl.u32 %v356, 7
    %v358 = vsub.s32 %v355, %v357
    %v359 = vrot.slane %v345, %v358
    %v360 = vcombine.high %v352, %v352
    %v361 = vcombine.high %v359, %v359
    %v622 = vunpack.c.l.b16 %v39
    %v623 = vunpack.c.h.b16 %v39
    %v624 = vunpack.c.l.b16 %v40
    %v625 = vunpack.c.h.b16 %v40
    %v626 = vunpack.c.l.b16 %v41
    %v627 = vunpack.c.h.b16 %v41
    %v628 = vunpack.c.l.b16 %v42
    %v629 = vunpack.c.h.b16 %v42
    %v630 = vunpack.c.l.b16 %v43
    %v631 = vunpack.c.h.b16 %v43
    %v632 = vunpack.c.l.b16 %v44
    %v633 = vunpack.c.h.b16 %v44
    %v634 = vunpack.c.l.b16 %v45
    %v635 = vunpack.c.h.b16 %v45
    %v636 = vunpack.c.l.b16 %v46
    %v637 = vunpack.c.h.b16 %v46
    %v638 = vunpack.c.l.b16 %v47
    %v639 = vunpack.c.h.b16 %v47
    %v640 = vunpack.c.l.b16 %v48
    %v641 = vunpack.c.h.b16 %v48
    %v642 = vunpack.c.l.b16 %v49
    %v643 = vunpack.c.h.b16 %v49
    %v644 = vunpack.c.l.b16 %v50
    %v645 = vunpack.c.h.b16 %v50
    %v646 = vunpack.c.l.b16 %v51
    %v647 = vunpack.c.h.b16 %v51
    %v648 = vunpack.c.l.b16 %v52
    %v649 = vunpack.c.h.b16 %v52
    %v650 = vunpack.c.l.b16 %v53
    %v651 = vunpack.c.h.b16 %v53
    %v652 = vunpack.c.l.b16 %v54
    %v653 = vunpack.c.h.b16 %v54
    %v654 = vunpack.c.l.b16 %v55
    %v655 = vunpack.c.h.b16 %v55
    %v656 = vunpack.c.l.b16 %v56
    %v657 = vunpack.c.h.b16 %v56
    %v658 = vunpack.c.l.b16 %v57
    %v659 = vunpack.c.h.b16 %v57
    %v660 = vunpack.c.l.b16 %v58
    %v661 = vunpack.c.h.b16 %v58
    %v662 = vunpack.c.l.b16 %v59
    %v663 = vunpack.c.h.b16 %v59
    %v664 = vunpack.c.l.b16 %v60
    %v665 = vunpack.c.h.b16 %v60
    %v666 = vunpack.c.l.b16 %v61
    %v667 = vunpack.c.h.b16 %v61
    %v668 = vunpack.c.l.b16 %v62
    %v669 = vunpack.c.h.b16 %v62
    %v670 = vunpack.c.l.b16 %v63
    %v671 = vunpack.c.h.b16 %v63
    %v672 = vunpack.c.l.b16 %v64
    %v673 = vunpack.c.h.b16 %v64
    %v674 = vunpack.c.l.b16 %v65
    %v675 = vunpack.c.h.b16 %v65
    %v676 = vunpack.c.l.b16 %v66
    %v677 = vunpack.c.h.b16 %v66
    %v678 = vunpack.c.l.b16 %v67
    %v679 = vunpack.c.h.b16 %v67
    %v680 = vunpack.c.l.b16 %v68
    %v681 = vunpack.c.h.b16 %v68
    %v682 = vunpack.c.l.b16 %v69
    %v683 = vunpack.c.h.b16 %v69
    %v684 = vunpack.c.l.b16 %v70
    %v685 = vunpack.c.h.b16 %v70
    %v686 = vunpack.c.l.b16 %v71
    %v687 = vunpack.c.h.b16 %v71
    %v688 = vunpack.c.l.b16 %v72
    %v689 = vunpack.c.h.b16 %v72
    %v690 = vunpack.c.l.b16 %v73
    %v691 = vunpack.c.h.b16 %v73
    %v692 = vunpack.c.l.b16 %v74
    %v693 = vunpack.c.h.b16 %v74
    %v694 = vunpack.c.l.b16 %v75
    %v695 = vunpack.c.h.b16 %v75
    %v696 = vunpack.c.l.b16 %v76
    %v697 = vunpack.c.h.b16 %v76
    %v698 = vunpack.c.l.b16 %v77
    %v699 = vunpack.c.h.b16 %v77
    %v700 = vunpack.c.l.b16 %v78
    %v701 = vunpack.c.h.b16 %v78
    %v702 = vunpack.c.l.b16 %v79
    %v703 = vunpack.c.h.b16 %v79
    %v704 = vunpack.c.l.b16 %v80
    %v705 = vunpack.c.h.b16 %v80
    %v706 = vunpack.c.l.b16 %v81
    %v707 = vunpack.c.h.b16 %v81
    %v708 = vunpack.c.l.b16 %v82
    %v709 = vunpack.c.h.b16 %v82
    %v710 = vunpack.c.l.b16 %v83
    %v711 = vunpack.c.h.b16 %v83
    %v712 = vunpack.c.l.b16 %v84
    %v713 = vunpack.c.h.b16 %v84
    %v714 = vunpack.c.l.b16 %v85
    %v715 = vunpack.c.h.b16 %v85
    %v716 = vunpack.c.l.b16 %v86
    %v717 = vunpack.c.h.b16 %v86
    %v718 = vunpack.c.l.b16 %v87
    %v719 = vunpack.c.h.b16 %v87
    %v720 = vunpack.c.l.b16 %v88
    %v721 = vunpack.c.h.b16 %v88
    %v722 = vunpack.c.l.b16 %v89
    %v723 = vunpack.c.h.b16 %v89
    %v724 = vunpack.c.l.b16 %v90
    %v725 = vunpack.c.h.b16 %v90
    %v726 = vunpack.c.l.b16 %v91
    %v727 = vunpack.c.h.b16 %v91
    %v728 = vunpack.c.l.b16 %v92
    %v729 = vunpack.c.h.b16 %v92
    %v730 = vunpack.c.l.b16 %v93
    %v731 = vunpack.c.h.b16 %v93
    %v732 = vunpack.c.l.b16 %v94
    %v733 = vunpack.c.h.b16 %v94
    %v734 = vunpack.c.l.b16 %v95
    %v735 = vunpack.c.h.b16 %v95
    %v736 = vunpack.c.l.b16 %v96
    %v737 = vunpack.c.h.b16 %v96
    %v738 = vunpack.c.l.b16 %v97
    %v739 = vunpack.c.h.b16 %v97
    %v740 = vunpack.c.l.b16 %v98
    %v741 = vunpack.c.h.b16 %v98
    %v742 = vunpack.c.l.b16 %v99
    %v743 = vunpack.c.h.b16 %v99
    %v744 = vunpack.c.l.b16 %v100
    %v745 = vunpack.c.h.b16 %v100
    %v746 = vunpack.c.l.b16 %v101
    %v747 = vunpack.c.h.b16 %v101
    %v748 = vunpack.c.l.b16 %v102
    %v749 = vunpack.c.h.b16 %v102
    %v750 = vunpack.c.l.b16 %v103
    %v751 = vunpack.c.h.b16 %v103
    %v752 = vunpack.c.l.b16 %v104
    %v753 = vunpack.c.h.b16 %v104
    %v754 = vunpack.c.l.b16 %v105
    %v755 = vunpack.c.h.b16 %v105
    %v756 = vunpack.c.l.b16 %v106
    %v757 = vunpack.c.h.b16 %v106
    %v758 = vunpack.c.l.b16 %v107
    %v759 = vunpack.c.h.b16 %v107
    %v760 = vunpack.c.l.b16 %v108
    %v761 = vunpack.c.h.b16 %v108
    %v762 = vunpack.c.l.b16 %v109
    %v763 = vunpack.c.h.b16 %v109
    %v764 = vunpack.c.l.b16 %v110
    %v765 = vunpack.c.h.b16 %v110
    %v766 = vunpack.c.l.b16 %v111
    %v767 = vunpack.c.h.b16 %v111
    %v768 = vunpack.c.l.b16 %v112
    %v769 = vunpack.c.h.b16 %v112
    %v770 = vunpack.c.l.b16 %v113
    %v771 = vunpack.c.h.b16 %v113
    %v772 = vunpack.c.l.b16 %v114
    %v773 = vunpack.c.h.b16 %v114
    %v774 = vunpack.c.l.b16 %v115
    %v775 = vunpack.c.h.b16 %v115
    %v776 = vunpack.c.l.b16 %v116
    %v777 = vunpack.c.h.b16 %v116
    %v778 = vunpack.c.l.b16 %v117
    %v779 = vunpack.c.h.b16 %v117
    %v780 = vunpack.c.l.b16 %v118
    %v781 = vunpack.c.h.b16 %v118
    %v782 = vunpack.c.l.b16 %v119
    %v783 = vunpack.c.h.b16 %v119
    %v784 = vunpack.c.l.b16 %v120
    %v785 = vunpack.c.h.b16 %v120
    %v786 = vunpack.c.l.b16 %v121
    %v787 = vunpack.c.h.b16 %v121
    %v788 = vunpack.c.l.b16 %v122
    %v789 = vunpack.c.h.b16 %v122
    %v790 = vunpack.c.l.b16 %v123
    %v791 = vunpack.c.h.b16 %v123
    %v792 = vunpack.c.l.b16 %v124
    %v793 = vunpack.c.h.b16 %v124
    %v794 = vunpack.c.l.b16 %v125
    %v795 = vunpack.c.h.b16 %v125
    %v796 = vunpack.c.l.b16 %v126
    %v797 = vunpack.c.h.b16 %v126
    %v798 = vunpack.c.l.b16 %v127
    %v799 = vunpack.c.h.b16 %v127
    %v800 = vunpack.c.l.b16 %v128
    %v801 = vunpack.c.h.b16 %v128
    %v802 = vunpack.c.l.b16 %v129
    %v803 = vunpack.c.h.b16 %v129
    %v804 = vunpack.c.l.b16 %v130
    %v805 = vunpack.c.h.b16 %v130
    %v806 = vunpack.c.l.b16 %v131
    %v807 = vunpack.c.h.b16 %v131
    %v808 = vunpack.c.l.b16 %v132
    %v809 = vunpack.c.h.b16 %v132
    %v810 = vunpack.c.l.b16 %v133
    %v811 = vunpack.c.h.b16 %v133
    %v812 = vunpack.c.l.b16 %v134
    %v813 = vunpack.c.h.b16 %v134
    %v814 = vunpack.c.l.b16 %v135
    %v815 = vunpack.c.h.b16 %v135
    %v816 = vunpack.c.l.b16 %v136
    %v817 = vunpack.c.h.b16 %v136
    %v818 = vunpack.c.l.b16 %v137
    %v819 = vunpack.c.h.b16 %v137
    %v820 = vunpack.c.l.b16 %v138
    %v821 = vunpack.c.h.b16 %v138
    %v822 = vunpack.c.l.b16 %v139
    %v823 = vunpack.c.h.b16 %v139
    %v824 = vunpack.c.l.b16 %v140
    %v825 = vunpack.c.h.b16 %v140
    %v826 = vunpack.c.l.b16 %v141
    %v827 = vunpack.c.h.b16 %v141
    %v828 = vunpack.c.l.b16 %v142
    %v829 = vunpack.c.h.b16 %v142
    %v830 = vunpack.c.l.b16 %v143
    %v831 = vunpack.c.h.b16 %v143
    %v832 = vunpack.c.l.b16 %v144
    %v833 = vunpack.c.h.b16 %v144
    %v834 = vunpack.c.l.b16 %v145
    %v835 = vunpack.c.h.b16 %v145
    %v836 = vunpack.c.l.b16 %v146
    %v837 = vunpack.c.h.b16 %v146
    %v838 = vunpack.c.l.b16 %v147
    %v839 = vunpack.c.h.b16 %v147
    %v840 = vunpack.c.l.b16 %v148
    %v841 = vunpack.c.h.b16 %v148
    %v842 = vunpack.c.l.b16 %v149
    %v843 = vunpack.c.h.b16 %v149
    %v844 = vunpack.c.l.b16 %v150
    %v845 = vunpack.c.h.b16 %v150
    %v846 = vunpack.c.l.b16 %v151
    %v847 = vunpack.c.h.b16 %v151
    %v848 = vunpack.c.l.b16 %v152
    %v849 = vunpack.c.h.b16 %v152
    %v850 = vunpack.c.l.b16 %v153
    %v851 = vunpack.c.h.b16 %v153
    %v852 = vunpack.c.l.b16 %v154
    %v853 = vunpack.c.h.b16 %v154
    %v854 = vunpack.c.l.b16 %v155
    %v855 = vunpack.c.h.b16 %v155
    %v856 = vunpack.c.l.b16 %v156
    %v857 = vunpack.c.h.b16 %v156
    %v858 = vunpack.c.l.b16 %v157
    %v859 = vunpack.c.h.b16 %v157
    %v860 = vunpack.c.l.b16 %v158
    %v861 = vunpack.c.h.b16 %v158
    %v862 = vunpack.c.l.b16 %v159
    %v863 = vunpack.c.h.b16 %v159
    %v864 = vunpack.c.l.b16 %v160
    %v865 = vunpack.c.h.b16 %v160
    %v866 = vunpack.c.l.b16 %v161
    %v867 = vunpack.c.h.b16 %v161
    %v868 = vunpack.c.l.b16 %v162
    %v869 = vunpack.c.h.b16 %v162
    %v870 = vunpack.c.l.b16 %v163
    %v871 = vunpack.c.h.b16 %v163
    %v872 = vunpack.c.l.b16 %v164
    %v873 = vunpack.c.h.b16 %v164
    %v874 = vunpack.c.l.b16 %v165
    %v875 = vunpack.c.h.b16 %v165
    %v876 = vunpack.c.l.b16 %v166
    %v877 = vunpack.c.h.b16 %v166
    %v878 = vunpack.c.l.b16 %v167
    %v879 = vunpack.c.h.b16 %v167
    %v880 = vunpack.c.l.b16 %v168
    %v881 = vunpack.c.h.b16 %v168
    %v882 = vunpack.c.l.b16 %v169
    %v883 = vunpack.c.h.b16 %v169
    %v884 = vunpack.c.l.b16 %v170
    %v885 = vunpack.c.h.b16 %v170
    %v886 = vunpack.c.l.b16 %v171
    %v887 = vunpack.c.h.b16 %v171
    %v888 = vunpack.c.l.b16 %v172
    %v889 = vunpack.c.h.b16 %v172
    %v890 = vunpack.c.l.b16 %v173
    %v891 = vunpack.c.h.b16 %v173
    %v892 = vunpack.c.l.b16 %v174
    %v893 = vunpack.c.h.b16 %v174
    %v894 = vunpack.c.l.b16 %v175
    %v895 = vunpack.c.h.b16 %v175
    %v896 = vunpack.c.l.b16 %v176
    %v897 = vunpack.c.h.b16 %v176
    %v898 = vunpack.c.l.b16 %v177
    %v899 = vunpack.c.h.b16 %v177
    %v900 = vunpack.c.l.b16 %v178
    %v901 = vunpack.c.h.b16 %v178
    %v902 = vunpack.c.l.b16 %v179
    %v903 = vunpack.c.h.b16 %v179
    %v904 = vunpack.c.l.b16 %v180
    %v905 = vunpack.c.h.b16 %v180
    %v906 = vunpack.c.l.b16 %v181
    %v907 = vunpack.c.h.b16 %v181
    %v908 = vunpack.c.l.b16 %v182
    %v909 = vunpack.c.h.b16 %v182
    %v910 = vunpack.c.l.b16 %v183
    %v911 = vunpack.c.h.b16 %v183
    %v912 = vunpack.c.l.b16 %v184
    %v913 = vunpack.c.h.b16 %v184
    %v914 = vunpack.c.l.b16 %v185
    %v915 = vunpack.c.h.b16 %v185
    %v916 = vunpack.c.l.b16 %v186
    %v917 = vunpack.c.h.b16 %v186
    %v918 = vunpack.c.l.b16 %v187
    %v919 = vunpack.c.h.b16 %v187
    %v920 = vunpack.c.l.b16 %v188
    %v921 = vunpack.c.h.b16 %v188
    %v922 = vunpack.c.l.b16 %v189
    %v923 = vunpack.c.h.b16 %v189
    %v924 = vunpack.c.l.b16 %v190
    %v925 = vunpack.c.h.b16 %v190
    %v926 = vunpack.c.l.b16 %v191
    %v927 = vunpack.c.h.b16 %v191
    %v928 = vunpack.c.l.b16 %v192
    %v929 = vunpack.c.h.b16 %v192
    %v930 = vunpack.c.l.b16 %v193
    %v931 = vunpack.c.h.b16 %v193
    %v932 = vunpack.c.l.b16 %v194
    %v933 = vunpack.c.h.b16 %v194
    %v934 = vunpack.c.l.b16 %v195
    %v935 = vunpack.c.h.b16 %v195
    %v936 = vunpack.c.l.b16 %v196
    %v937 = vunpack.c.h.b16 %v196
    %v938 = vunpack.c.l.b16 %v197
    %v939 = vunpack.c.h.b16 %v197
    %v940 = vunpack.c.l.b16 %v198
    %v941 = vunpack.c.h.b16 %v198
    %v942 = vunpack.c.l.b16 %v199
    %v943 = vunpack.c.h.b16 %v199
    %v944 = vunpack.c.l.b16 %v200
    %v945 = vunpack.c.h.b16 %v200
    %v946 = vunpack.c.l.b16 %v201
    %v947 = vunpack.c.h.b16 %v201
    %v948 = vunpack.c.l.b16 %v202
    %v949 = vunpack.c.h.b16 %v202
    %v950 = vunpack.c.l.b16 %v203
    %v951 = vunpack.c.h.b16 %v203
    %v952 = vunpack.c.l.b16 %v204
    %v953 = vunpack.c.h.b16 %v204
    %v954 = vunpack.c.l.b16 %v205
    %v955 = vunpack.c.h.b16 %v205
    %v956 = vunpack.c.l.b16 %v206
    %v957 = vunpack.c.h.b16 %v206
    %v958 = vunpack.c.l.b16 %v207
    %v959 = vunpack.c.h.b16 %v207
    %v960 = vunpack.c.l.b16 %v208
    %v961 = vunpack.c.h.b16 %v208
    %v962 = vunpack.c.l.b16 %v209
    %v963 = vunpack.c.h.b16 %v209
    %v964 = vunpack.c.l.b16 %v210
    %v965 = vunpack.c.h.b16 %v210
    %v966 = vunpack.c.l.b16 %v211
    %v967 = vunpack.c.h.b16 %v211
    %v968 = vunpack.c.l.b16 %v212
    %v969 = vunpack.c.h.b16 %v212
    %v970 = vunpack.c.l.b16 %v213
    %v971 = vunpack.c.h.b16 %v213
    %v972 = vunpack.c.l.b16 %v214
    %v973 = vunpack.c.h.b16 %v214
    %v974 = vunpack.c.l.b16 %v215
    %v975 = vunpack.c.h.b16 %v215
    %v976 = vunpack.c.l.b16 %v216
    %v977 = vunpack.c.h.b16 %v216
    %v978 = vunpack.c.l.b16 %v217
    %v979 = vunpack.c.h.b16 %v217
    %v980 = vunpack.c.l.b16 %v218
    %v981 = vunpack.c.h.b16 %v218
    %v982 = vunpack.c.l.b16 %v219
    %v983 = vunpack.c.h.b16 %v219
    %v984 = vunpack.c.l.b16 %v220
    %v985 = vunpack.c.h.b16 %v220
    %v986 = vunpack.c.l.b16 %v221
    %v987 = vunpack.c.h.b16 %v221
    %v988 = vunpack.c.l.b16 %v222
    %v989 = vunpack.c.h.b16 %v222
    %v990 = vunpack.c.l.b16 %v223
    %v991 = vunpack.c.h.b16 %v223
    %v992 = vunpack.c.l.b16 %v224
    %v993 = vunpack.c.h.b16 %v224
    %v994 = vunpack.c.l.b16 %v225
    %v995 = vunpack.c.h.b16 %v225
    %v996 = vunpack.c.l.b16 %v226
    %v997 = vunpack.c.h.b16 %v226
    %v998 = vunpack.c.l.b16 %v227
    %v999 = vunpack.c.h.b16 %v227
    %v1000 = vunpack.c.l.b16 %v228
    %v1001 = vunpack.c.h.b16 %v228
    %v1002 = vunpack.c.l.b16 %v229
    %v1003 = vunpack.c.h.b16 %v229
    %v1004 = vunpack.c.l.b16 %v230
    %v1005 = vunpack.c.h.b16 %v230
    %v1006 = vunpack.c.l.b16 %v231
    %v1007 = vunpack.c.h.b16 %v231
    %v1008 = vunpack.c.l.b16 %v232
    %v1009 = vunpack.c.h.b16 %v232
    %v1010 = vunpack.c.l.b16 %v233
    %v1011 = vunpack.c.h.b16 %v233
    %v1012 = vunpack.c.l.b16 %v234
    %v1013 = vunpack.c.h.b16 %v234
    %v1014 = vunpack.c.l.b16 %v235
    %v1015 = vunpack.c.h.b16 %v235
    %v1016 = vunpack.c.l.b16 %v236
    %v1017 = vunpack.c.h.b16 %v236
    %v1018 = vunpack.c.l.b16 %v237
    %v1019 = vunpack.c.h.b16 %v237
    %v1020 = vunpack.c.l.b16 %v238
    %v1021 = vunpack.c.h.b16 %v238
    %v1022 = vunpack.c.l.b16 %v239
    %v1023 = vunpack.c.h.b16 %v239
    %v1024 = vunpack.c.l.b16 %v240
    %v1025 = vunpack.c.h.b16 %v240
    %v1026 = vunpack.c.l.b16 %v241
    %v1027 = vunpack.c.h.b16 %v241
    %v1028 = vunpack.c.l.b16 %v242
    %v1029 = vunpack.c.h.b16 %v242
    %v1030 = vunpack.c.l.b16 %v243
    %v1031 = vunpack.c.h.b16 %v243
    %v1032 = vunpack.c.l.b16 %v244
    %v1033 = vunpack.c.h.b16 %v244
    %v1034 = vunpack.c.l.b16 %v245
    %v1035 = vunpack.c.h.b16 %v245
    %v1036 = vunpack.c.l.b16 %v246
    %v1037 = vunpack.c.h.b16 %v246
    %v1038 = vunpack.c.l.b16 %v247
    %v1039 = vunpack.c.h.b16 %v247
    %v1040 = vunpack.c.l.b16 %v248
    %v1041 = vunpack.c.h.b16 %v248
    %v1042 = vunpack.c.l.b16 %v249
    %v1043 = vunpack.c.h.b16 %v249
    %v1044 = vunpack.c.l.b16 %v250
    %v1045 = vunpack.c.h.b16 %v250
    %v1046 = vunpack.c.l.b16 %v251
    %v1047 = vunpack.c.h.b16 %v251
    %v1048 = vunpack.c.l.b16 %v252
    %v1049 = vunpack.c.h.b16 %v252
    %v1050 = vunpack.c.l.b16 %v253
    %v1051 = vunpack.c.h.b16 %v253
    %v1052 = vunpack.c.l.b16 %v254
    %v1053 = vunpack.c.h.b16 %v254
    %v1054 = vunpack.c.l.b16 %v255
    %v1055 = vunpack.c.h.b16 %v255
    %v1056 = vunpack.c.l.b16 %v256
    %v1057 = vunpack.c.h.b16 %v256
    %v1058 = vunpack.c.l.b16 %v257
    %v1059 = vunpack.c.h.b16 %v257
    %v1060 = vunpack.c.l.b16 %v258
    %v1061 = vunpack.c.h.b16 %v258
    %v1062 = vunpack.c.l.b16 %v259
    %v1063 = vunpack.c.h.b16 %v259
    %v1064 = vunpack.c.l.b16 %v260
    %v1065 = vunpack.c.h.b16 %v260
    %v1066 = vunpack.c.l.b16 %v261
    %v1067 = vunpack.c.h.b16 %v261
    %v1068 = vunpack.c.l.b16 %v262
    %v1069 = vunpack.c.h.b16 %v262
    %v1070 = vunpack.c.l.b16 %v263
    %v1071 = vunpack.c.h.b16 %v263
    %v1072 = vunpack.c.l.b16 %v264
    %v1073 = vunpack.c.h.b16 %v264
    %v1074 = vunpack.c.l.b16 %v265
    %v1075 = vunpack.c.h.b16 %v265
    %v1076 = vunpack.c.l.b16 %v266
    %v1077 = vunpack.c.h.b16 %v266
    %v1078 = vunpack.c.l.b16 %v267
    %v1079 = vunpack.c.h.b16 %v267
    %v1080 = vunpack.c.l.b16 %v268
    %v1081 = vunpack.c.h.b16 %v268
    %v1082 = vunpack.c.l.b16 %v269
    %v1083 = vunpack.c.h.b16 %v269
    %v1084 = vunpack.c.l.b16 %v270
    %v1085 = vunpack.c.h.b16 %v270
    %v1086 = vunpack.c.l.b16 %v271
    %v1087 = vunpack.c.h.b16 %v271
    %v1088 = vunpack.c.l.b16 %v272
    %v1089 = vunpack.c.h.b16 %v272
    %v1090 = vunpack.c.l.b16 %v273
    %v1091 = vunpack.c.h.b16 %v273
    %v1092 = vunpack.c.l.b16 %v274
    %v1093 = vunpack.c.h.b16 %v274
    %v1094 = vunpack.c.l.b16 %v275
    %v1095 = vunpack.c.h.b16 %v275
    %v1096 = vunpack.c.l.b16 %v276
    %v1097 = vunpack.c.h.b16 %v276
    %v1098 = vunpack.c.l.b16 %v277
    %v1099 = vunpack.c.h.b16 %v277
    %v1100 = vunpack.c.l.b16 %v278
    %v1101 = vunpack.c.h.b16 %v278
    %v1102 = vunpack.c.l.b16 %v279
    %v1103 = vunpack.c.h.b16 %v279
    %v1104 = vunpack.c.l.b16 %v280
    %v1105 = vunpack.c.h.b16 %v280
    %v1106 = vunpack.c.l.b16 %v281
    %v1107 = vunpack.c.h.b16 %v281
    %v1108 = vunpack.c.l.b16 %v282
    %v1109 = vunpack.c.h.b16 %v282
    %v1110 = vunpack.c.l.b16 %v283
    %v1111 = vunpack.c.h.b16 %v283
    %v1112 = vunpack.c.l.b16 %v284
    %v1113 = vunpack.c.h.b16 %v284
    %v1114 = vunpack.c.l.b16 %v285
    %v1115 = vunpack.c.h.b16 %v285
    %v1116 = vunpack.c.l.b16 %v286
    %v1117 = vunpack.c.h.b16 %v286
    %v1118 = vunpack.c.l.b16 %v287
    %v1119 = vunpack.c.h.b16 %v287
    %v1120 = vunpack.c.l.b16 %v288
    %v1121 = vunpack.c.h.b16 %v288
    %v1122 = vunpack.c.l.b16 %v289
    %v1123 = vunpack.c.h.b16 %v289
    %v1124 = vunpack.c.l.b16 %v290
    %v1125 = vunpack.c.h.b16 %v290
    %v1126 = vunpack.c.l.b16 %v291
    %v1127 = vunpack.c.h.b16 %v291
    %v1128 = vunpack.c.l.b16 %v292
    %v1129 = vunpack.c.h.b16 %v292
    %v1130 = vunpack.c.l.b16 %v293
    %v1131 = vunpack.c.h.b16 %v293
    %v1132 = vunpack.c.l.b16 %v294
    %v1133 = vunpack.c.h.b16 %v294
    %v1134 = vpack.c.b16 %v630, %v622
    %v1135 = vpack.c.b16 %v631, %v623
    %v1136 = vpack.c.b16 %v632, %v624
    %v1137 = vpack.c.b16 %v633, %v625
    %v1138 = vpack.c.b16 %v634, %v626
    %v1139 = vpack.c.b16 %v635, %v627
    %v1140 = vpack.c.b16 %v636, %v628
    %v1141 = vpack.c.b16 %v637, %v629
    %v1142 = vpack.c.b16 %v646, %v638
    %v1143 = vpack.c.b16 %v647, %v639
    %v1144 = vpack.c.b16 %v648, %v640
    %v1145 = vpack.c.b16 %v649, %v641
    %v1146 = vpack.c.b16 %v650, %v642
    %v1147 = vpack.c.b16 %v651, %v643
    %v1148 = vpack.c.b16 %v652, %v644
    %v1149 = vpack.c.b16 %v653, %v645
    %v1150 = vpack.c.b16 %v662, %v654
    %v1151 = vpack.c.b16 %v663, %v655
    %v1152 = vpack.c.b16 %v664, %v656
    %v1153 = vpack.c.b16 %v665, %v657
    %v1154 = vpack.c.b16 %v666, %v658
    %v1155 = vpack.c.b16 %v667, %v659
    %v1156 = vpack.c.b16 %v668, %v660
    %v1157 = vpack.c.b16 %v669, %v661
    %v1158 = vpack.c.b16 %v678, %v670
    %v1159 = vpack.c.b16 %v679, %v671
    %v1160 = vpack.c.b16 %v680, %v672
    %v1161 = vpack.c.b16 %v681, %v673
    %v1162 = vpack.c.b16 %v682, %v674
    %v1163 = vpack.c.b16 %v683, %v675
    %v1164 = vpack.c.b16 %v684, %v676
    %v1165 = vpack.c.b16 %v685, %v677
    %v1166 = vpack.c.b16 %v694, %v686
    %v1167 = vpack.c.b16 %v695, %v687
    %v1168 = vpack.c.b16 %v696, %v688
    %v1169 = vpack.c.b16 %v697, %v689
    %v1170 = vpack.c.b16 %v698, %v690
    %v1171 = vpack.c.b16 %v699, %v691
    %v1172 = vpack.c.b16 %v700, %v692
    %v1173 = vpack.c.b16 %v701, %v693
    %v1174 = vpack.c.b16 %v710, %v702
    %v1175 = vpack.c.b16 %v711, %v703
    %v1176 = vpack.c.b16 %v712, %v704
    %v1177 = vpack.c.b16 %v713, %v705
    %v1178 = vpack.c.b16 %v714, %v706
    %v1179 = vpack.c.b16 %v715, %v707
    %v1180 = vpack.c.b16 %v716, %v708
    %v1181 = vpack.c.b16 %v717, %v709
    %v1182 = vpack.c.b16 %v726, %v718
    %v1183 = vpack.c.b16 %v727, %v719
    %v1184 = vpack.c.b16 %v728, %v720
    %v1185 = vpack.c.b16 %v729, %v721
    %v1186 = vpack.c.b16 %v730, %v722
    %v1187 = vpack.c.b16 %v731, %v723
    %v1188 = vpack.c.b16 %v732, %v724
    %v1189 = vpack.c.b16 %v733, %v725
    %v1190 = vpack.c.b16 %v742, %v734
    %v1191 = vpack.c.b16 %v743, %v735
    %v1192 = vpack.c.b16 %v744, %v736
    %v1193 = vpack.c.b16 %v745, %v737
    %v1194 = vpack.c.b16 %v746, %v738
    %v1195 = vpack.c.b16 %v747, %v739
    %v1196 = vpack.c.b16 %v748, %v740
    %v1197 = vpack.c.b16 %v749, %v741
    %v1198 = vpack.c.b16 %v758, %v750
    %v1199 = vpack.c.b16 %v759, %v751
    %v1200 = vpack.c.b16 %v760, %v752
    %v1201 = vpack.c.b16 %v761, %v753
    %v1202 = vpack.c.b16 %v762, %v754
    %v1203 = vpack.c.b16 %v763, %v755
    %v1204 = vpack.c.b16 %v764, %v756
    %v1205 = vpack.c.b16 %v765, %v757
    %v1206 = vpack.c.b16 %v774, %v766
    %v1207 = vpack.c.b16 %v775, %v767
    %v1208 = vpack.c.b16 %v776, %v768
    %v1209 = vpack.c.b16 %v777, %v769
    %v1210 = vpack.c.b16 %v778, %v770
    %v1211 = vpack.c.b16 %v779, %v771
    %v1212 = vpack.c.b16 %v780, %v772
    %v1213 = vpack.c.b16 %v781, %v773
    %v1214 = vpack.c.b16 %v790, %v782
    %v1215 = vpack.c.b16 %v791, %v783
    %v1216 = vpack.c.b16 %v792, %v784
    %v1217 = vpack.c.b16 %v793, %v785
    %v1218 = vpack.c.b16 %v794, %v786
    %v1219 = vpack.c.b16 %v795, %v787
    %v1220 = vpack.c.b16 %v796, %v788
    %v1221 = vpack.c.b16 %v797, %v789
    %v1222 = vpack.c.b16 %v806, %v798
    %v1223 = vpack.c.b16 %v807, %v799
    %v1224 = vpack.c.b16 %v808, %v800
    %v1225 = vpack.c.b16 %v809, %v801
    %v1226 = vpack.c.b16 %v810, %v802
    %v1227 = vpack.c.b16 %v811, %v803
    %v1228 = vpack.c.b16 %v812, %v804
    %v1229 = vpack.c.b16 %v813, %v805
    %v1230 = vpack.c.b16 %v822, %v814
    %v1231 = vpack.c.b16 %v823, %v815
    %v1232 = vpack.c.b16 %v824, %v816
    %v1233 = vpack.c.b16 %v825, %v817
    %v1234 = vpack.c.b16 %v826, %v818
    %v1235 = vpack.c.b16 %v827, %v819
    %v1236 = vpack.c.b16 %v828, %v820
    %v1237 = vpack.c.b16 %v829, %v821
    %v1238 = vpack.c.b16 %v838, %v830
    %v1239 = vpack.c.b16 %v839, %v831
    %v1240 = vpack.c.b16 %v840, %v832
    %v1241 = vpack.c.b16 %v841, %v833
    %v1242 = vpack.c.b16 %v842, %v834
    %v1243 = vpack.c.b16 %v843, %v835
    %v1244 = vpack.c.b16 %v844, %v836
    %v1245 = vpack.c.b16 %v845, %v837
    %v1246 = vpack.c.b16 %v854, %v846
    %v1247 = vpack.c.b16 %v855, %v847
    %v1248 = vpack.c.b16 %v856, %v848
    %v1249 = vpack.c.b16 %v857, %v849
    %v1250 = vpack.c.b16 %v858, %v850
    %v1251 = vpack.c.b16 %v859, %v851
    %v1252 = vpack.c.b16 %v860, %v852
    %v1253 = vpack.c.b16 %v861, %v853
    %v1254 = vpack.c.b16 %v870, %v862
    %v1255 = vpack.c.b16 %v871, %v863
    %v1256 = vpack.c.b16 %v872, %v864
    %v1257 = vpack.c.b16 %v873, %v865
    %v1258 = vpack.c.b16 %v874, %v866
    %v1259 = vpack.c.b16 %v875, %v867
    %v1260 = vpack.c.b16 %v876, %v868
    %v1261 = vpack.c.b16 %v877, %v869
    %v1262 = vpack.c.b16 %v886, %v878
    %v1263 = vpack.c.b16 %v887, %v879
    %v1264 = vpack.c.b16 %v888, %v880
    %v1265 = vpack.c.b16 %v889, %v881
    %v1266 = vpack.c.b16 %v890, %v882
    %v1267 = vpack.c.b16 %v891, %v883
    %v1268 = vpack.c.b16 %v892, %v884
    %v1269 = vpack.c.b16 %v893, %v885
    %v1270 = vpack.c.b16 %v902, %v894
    %v1271 = vpack.c.b16 %v903, %v895
    %v1272 = vpack.c.b16 %v904, %v896
    %v1273 = vpack.c.b16 %v905, %v897
    %v1274 = vpack.c.b16 %v906, %v898
    %v1275 = vpack.c.b16 %v907, %v899
    %v1276 = vpack.c.b16 %v908, %v900
    %v1277 = vpack.c.b16 %v909, %v901
    %v1278 = vpack.c.b16 %v918, %v910
    %v1279 = vpack.c.b16 %v919, %v911
    %v1280 = vpack.c.b16 %v920, %v912
    %v1281 = vpack.c.b16 %v921, %v913
    %v1282 = vpack.c.b16 %v922, %v914
    %v1283 = vpack.c.b16 %v923, %v915
    %v1284 = vpack.c.b16 %v924, %v916
    %v1285 = vpack.c.b16 %v925, %v917
    %v1286 = vpack.c.b16 %v934, %v926
    %v1287 = vpack.c.b16 %v935, %v927
    %v1288 = vpack.c.b16 %v936, %v928
    %v1289 = vpack.c.b16 %v937, %v929
    %v1290 = vpack.c.b16 %v938, %v930
    %v1291 = vpack.c.b16 %v939, %v931
    %v1292 = vpack.c.b16 %v940, %v932
    %v1293 = vpack.c.b16 %v941, %v933
    %v1294 = vpack.c.b16 %v950, %v942
    %v1295 = vpack.c.b16 %v951, %v943
    %v1296 = vpack.c.b16 %v952, %v944
    %v1297 = vpack.c.b16 %v953, %v945
    %v1298 = vpack.c.b16 %v954, %v946
    %v1299 = vpack.c.b16 %v955, %v947
    %v1300 = vpack.c.b16 %v956, %v948
    %v1301 = vpack.c.b16 %v957, %v949
    %v1302 = vpack.c.b16 %v966, %v958
    %v1303 = vpack.c.b16 %v967, %v959
    %v1304 = vpack.c.b16 %v968, %v960
    %v1305 = vpack.c.b16 %v969, %v961
    %v1306 = vpack.c.b16 %v970, %v962
    %v1307 = vpack.c.b16 %v971, %v963
    %v1308 = vpack.c.b16 %v972, %v964
    %v1309 = vpack.c.b16 %v973, %v965
    %v1310 = vpack.c.b16 %v982, %v974
    %v1311 = vpack.c.b16 %v983, %v975
    %v1312 = vpack.c.b16 %v984, %v976
    %v1313 = vpack.c.b16 %v985, %v977
    %v1314 = vpack.c.b16 %v986, %v978
    %v1315 = vpack.c.b16 %v987, %v979
    %v1316 = vpack.c.b16 %v988, %v980
    %v1317 = vpack.c.b16 %v989, %v981
    %v1318 = vpack.c.b16 %v998, %v990
    %v1319 = vpack.c.b16 %v999, %v991
    %v1320 = vpack.c.b16 %v1000, %v992
    %v1321 = vpack.c.b16 %v1001, %v993
    %v1322 = vpack.c.b16 %v1002, %v994
    %v1323 = vpack.c.b16 %v1003, %v995
    %v1324 = vpack.c.b16 %v1004, %v996
    %v1325 = vpack.c.b16 %v1005, %v997
    %v1326 = vpack.c.b16 %v1014, %v1006
    %v1327 = vpack.c.b16 %v1015, %v1007
    %v1328 = vpack.c.b16 %v1016, %v1008
    %v1329 = vpack.c.b16 %v1017, %v1009
    %v1330 = vpack.c.b16 %v1018, %v1010
    %v1331 = vpack.c.b16 %v1019, %v1011
    %v1332 = vpack.c.b16 %v1020, %v1012
    %v1333 = vpack.c.b16 %v1021, %v1013
    %v1334 = vpack.c.b16 %v1030, %v1022
    %v1335 = vpack.c.b16 %v1031, %v1023
    %v1336 = vpack.c.b16 %v1032, %v1024
    %v1337 = vpack.c.b16 %v1033, %v1025
    %v1338 = vpack.c.b16 %v1034, %v1026
    %v1339 = vpack.c.b16 %v1035, %v1027
    %v1340 = vpack.c.b16 %v1036, %v1028
    %v1341 = vpack.c.b16 %v1037, %v1029
    %v1342 = vpack.c.b16 %v1046, %v1038
    %v1343 = vpack.c.b16 %v1047, %v1039
    %v1344 = vpack.c.b16 %v1048, %v1040
    %v1345 = vpack.c.b16 %v1049, %v1041
    %v1346 = vpack.c.b16 %v1050, %v1042
    %v1347 = vpack.c.b16 %v1051, %v1043
    %v1348 = vpack.c.b16 %v1052, %v1044
    %v1349 = vpack.c.b16 %v1053, %v1045
    %v1350 = vpack.c.b16 %v1062, %v1054
    %v1351 = vpack.c.b16 %v1063, %v1055
    %v1352 = vpack.c.b16 %v1064, %v1056
    %v1353 = vpack.c.b16 %v1065, %v1057
    %v1354 = vpack.c.b16 %v1066, %v1058
    %v1355 = vpack.c.b16 %v1067, %v1059
    %v1356 = vpack.c.b16 %v1068, %v1060
    %v1357 = vpack.c.b16 %v1069, %v1061
    %v1358 = vpack.c.b16 %v1078, %v1070
    %v1359 = vpack.c.b16 %v1079, %v1071
    %v1360 = vpack.c.b16 %v1080, %v1072
    %v1361 = vpack.c.b16 %v1081, %v1073
    %v1362 = vpack.c.b16 %v1082, %v1074
    %v1363 = vpack.c.b16 %v1083, %v1075
    %v1364 = vpack.c.b16 %v1084, %v1076
    %v1365 = vpack.c.b16 %v1085, %v1077
    %v1366 = vpack.c.b16 %v1094, %v1086
    %v1367 = vpack.c.b16 %v1095, %v1087
    %v1368 = vpack.c.b16 %v1096, %v1088
    %v1369 = vpack.c.b16 %v1097, %v1089
    %v1370 = vpack.c.b16 %v1098, %v1090
    %v1371 = vpack.c.b16 %v1099, %v1091
    %v1372 = vpack.c.b16 %v1100, %v1092
    %v1373 = vpack.c.b16 %v1101, %v1093
    %v1374 = vpack.c.b16 %v1110, %v1102
    %v1375 = vpack.c.b16 %v1111, %v1103
    %v1376 = vpack.c.b16 %v1112, %v1104
    %v1377 = vpack.c.b16 %v1113, %v1105
    %v1378 = vpack.c.b16 %v1114, %v1106
    %v1379 = vpack.c.b16 %v1115, %v1107
    %v1380 = vpack.c.b16 %v1116, %v1108
    %v1381 = vpack.c.b16 %v1117, %v1109
    %v1382 = vpack.c.b16 %v1126, %v1118
    %v1383 = vpack.c.b16 %v1127, %v1119
    %v1384 = vpack.c.b16 %v1128, %v1120
    %v1385 = vpack.c.b16 %v1129, %v1121
    %v1386 = vpack.c.b16 %v1130, %v1122
    %v1387 = vpack.c.b16 %v1131, %v1123
    %v1388 = vpack.c.b16 %v1132, %v1124
    %v1389 = vpack.c.b16 %v1133, %v1125
    %1646 = vmatprep.subr.bf16.mxu0 %v1191
    %1647 = vmatpush1.bf16.msra.mxu0 %v1190
    %1648 = vmatprep.subr.bf16.mxu0 %v1183
    %1649 = vmatpush1.bf16.msra.mxu0 %v1182
    %1650 = vmatprep.subr.bf16.mxu0 %v1175
    %1651 = vmatpush1.bf16.msra.mxu0 %v1174
    %1652 = vmatprep.subr.bf16.mxu0 %v1167
    %1653 = vmatpush1.bf16.msra.mxu0 %v1166
    %1654 = vmatprep.subr.bf16.mxu0 %v1159
    %1655 = vmatpush1.bf16.msra.mxu0 %v1158
    %1656 = vmatprep.subr.bf16.mxu0 %v1151
    %1657 = vmatpush1.bf16.msra.mxu0 %v1150
    %1658 = vmatprep.subr.bf16.mxu0 %v1143
    %1659 = vmatpush1.bf16.msra.mxu0 %v1142
    %1660 = vmatprep.subr.bf16.mxu0 %v1135
    %1661 = vmatpush1.bf16.msra.mxu0 %v1134
    %1662 = vmatprep.subr.bf16.mxu0 %v1255
    %1663 = vmatpush2.bf16.msra.mxu0 %v1254
    %1664 = vmatprep.subr.bf16.mxu0 %v1247
    %1665 = vmatpush2.bf16.msra.mxu0 %v1246
    %1666 = vmatprep.subr.bf16.mxu0 %v1239
    %1667 = vmatpush2.bf16.msra.mxu0 %v1238
    %1668 = vmatprep.subr.bf16.mxu0 %v1231
    %1669 = vmatpush2.bf16.msra.mxu0 %v1230
    %1670 = vmatprep.subr.bf16.mxu0 %v1223
    %1671 = vmatpush2.bf16.msra.mxu0 %v1222
    %1672 = vmatprep.subr.bf16.mxu0 %v1215
    %1673 = vmatpush2.bf16.msra.mxu0 %v1214
    %1674 = vmatprep.subr.bf16.mxu0 %v1207
    %1675 = vmatpush2.bf16.msra.mxu0 %v1206
    %1676 = vmatprep.subr.bf16.mxu0 %v1199
    %1677 = vmatpush2.bf16.msra.mxu0 %v1198
    %1678 = vmatprep.mubr.bf16.mxu0 %v359
    %1679 = vmatmul.mubr.bf16.gmra.mxu0 %v352
    %v1680 = vpop.f32.mrf.mxu0
    %v1681 = vadd.f32 %v300, %v1680
    %v1682 = vpop.f32.mrf.mxu0
    %v1683 = vadd.f32 %v304, %v1682
    %v1684 = vpop.f32.mrf.mxu0
    %v1685 = vpop.f32.mrf.mxu0
    %1686 = vdwg.mxu0
    %1687 = vmatprep.subr.bf16.mxu0 %v1319
    %1688 = vmatpush1.bf16.msra.mxu0 %v1318
    %1689 = vmatprep.subr.bf16.mxu0 %v1311
    %1690 = vmatpush1.bf16.msra.mxu0 %v1310
    %1691 = vmatprep.subr.bf16.mxu0 %v1303
    %1692 = vmatpush1.bf16.msra.mxu0 %v1302
    %1693 = vmatprep.subr.bf16.mxu0 %v1295
    %1694 = vmatpush1.bf16.msra.mxu0 %v1294
    %1695 = vmatprep.subr.bf16.mxu0 %v1287
    %1696 = vmatpush1.bf16.msra.mxu0 %v1286
    %1697 = vmatprep.subr.bf16.mxu0 %v1279
    %1698 = vmatpush1.bf16.msra.mxu0 %v1278
    %1699 = vmatprep.subr.bf16.mxu0 %v1271
    %1700 = vmatpush1.bf16.msra.mxu0 %v1270
    %1701 = vmatprep.subr.bf16.mxu0 %v1263
    %1702 = vmatpush1.bf16.msra.mxu0 %v1262
    %1703 = vmatprep.subr.bf16.mxu0 %v1383
    %1704 = vmatpush2.bf16.msra.mxu0 %v1382
    %1705 = vmatprep.subr.bf16.mxu0 %v1375
    %1706 = vmatpush2.bf16.msra.mxu0 %v1374
    %1707 = vmatprep.subr.bf16.mxu0 %v1367
    %1708 = vmatpush2.bf16.msra.mxu0 %v1366
    %1709 = vmatprep.subr.bf16.mxu0 %v1359
    %1710 = vmatpush2.bf16.msra.mxu0 %v1358
    %1711 = vmatprep.subr.bf16.mxu0 %v1351
    %1712 = vmatpush2.bf16.msra.mxu0 %v1350
    %1713 = vmatprep.subr.bf16.mxu0 %v1343
    %1714 = vmatpush2.bf16.msra.mxu0 %v1342
    %1715 = vmatprep.subr.bf16.mxu0 %v1335
    %1716 = vmatpush2.bf16.msra.mxu0 %v1334
    %1717 = vmatprep.subr.bf16.mxu0 %v1327
    %1718 = vmatpush2.bf16.msra.mxu0 %v1326
    %1719 = vmatprep.mubr.bf16.mxu0 %v361
    %1720 = vmatmul.mubr.bf16.gmra.mxu0 %v360
    %v1721 = vpop.f32.mrf.mxu0
    %v1722 = vadd.f32 %v1681, %v1721
    %v1723 = vpop.f32.mrf.mxu0
    %v1724 = vadd.f32 %v1683, %v1723
    %v1725 = vpop.f32.mrf.mxu0
    %v1726 = vpop.f32.mrf.mxu0
    %1727 = vdwg.mxu0
    %1728 = vmatprep.subr.bf16.mxu0 %v1193
    %1729 = vmatpush1.bf16.msra.mxu0 %v1192
    %1730 = vmatprep.subr.bf16.mxu0 %v1185
    %1731 = vmatpush1.bf16.msra.mxu0 %v1184
    %1732 = vmatprep.subr.bf16.mxu0 %v1177
    %1733 = vmatpush1.bf16.msra.mxu0 %v1176
    %1734 = vmatprep.subr.bf16.mxu0 %v1169
    %1735 = vmatpush1.bf16.msra.mxu0 %v1168
    %1736 = vmatprep.subr.bf16.mxu0 %v1161
    %1737 = vmatpush1.bf16.msra.mxu0 %v1160
    %1738 = vmatprep.subr.bf16.mxu0 %v1153
    %1739 = vmatpush1.bf16.msra.mxu0 %v1152
    %1740 = vmatprep.subr.bf16.mxu0 %v1145
    %1741 = vmatpush1.bf16.msra.mxu0 %v1144
    %1742 = vmatprep.subr.bf16.mxu0 %v1137
    %1743 = vmatpush1.bf16.msra.mxu0 %v1136
    %1744 = vmatprep.subr.bf16.mxu0 %v1257
    %1745 = vmatpush2.bf16.msra.mxu0 %v1256
    %1746 = vmatprep.subr.bf16.mxu0 %v1249
    %1747 = vmatpush2.bf16.msra.mxu0 %v1248
    %1748 = vmatprep.subr.bf16.mxu0 %v1241
    %1749 = vmatpush2.bf16.msra.mxu0 %v1240
    %1750 = vmatprep.subr.bf16.mxu0 %v1233
    %1751 = vmatpush2.bf16.msra.mxu0 %v1232
    %1752 = vmatprep.subr.bf16.mxu0 %v1225
    %1753 = vmatpush2.bf16.msra.mxu0 %v1224
    %1754 = vmatprep.subr.bf16.mxu0 %v1217
    %1755 = vmatpush2.bf16.msra.mxu0 %v1216
    %1756 = vmatprep.subr.bf16.mxu0 %v1209
    %1757 = vmatpush2.bf16.msra.mxu0 %v1208
    %1758 = vmatprep.subr.bf16.mxu0 %v1201
    %1759 = vmatpush2.bf16.msra.mxu0 %v1200
    %1760 = vmatprep.mubr.bf16.mxu0 %v359
    %1761 = vmatmul.mubr.bf16.gmra.mxu0 %v352
    %v1762 = vpop.f32.mrf.mxu0
    %v1763 = vadd.f32 %v308, %v1762
    %v1764 = vpop.f32.mrf.mxu0
    %v1765 = vadd.f32 %v312, %v1764
    %v1766 = vpop.f32.mrf.mxu0
    %v1767 = vpop.f32.mrf.mxu0
    %1768 = vdwg.mxu0
    %1769 = vmatprep.subr.bf16.mxu0 %v1321
    %1770 = vmatpush1.bf16.msra.mxu0 %v1320
    %1771 = vmatprep.subr.bf16.mxu0 %v1313
    %1772 = vmatpush1.bf16.msra.mxu0 %v1312
    %1773 = vmatprep.subr.bf16.mxu0 %v1305
    %1774 = vmatpush1.bf16.msra.mxu0 %v1304
    %1775 = vmatprep.subr.bf16.mxu0 %v1297
    %1776 = vmatpush1.bf16.msra.mxu0 %v1296
    %1777 = vmatprep.subr.bf16.mxu0 %v1289
    %1778 = vmatpush1.bf16.msra.mxu0 %v1288
    %1779 = vmatprep.subr.bf16.mxu0 %v1281
    %1780 = vmatpush1.bf16.msra.mxu0 %v1280
    %1781 = vmatprep.subr.bf16.mxu0 %v1273
    %1782 = vmatpush1.bf16.msra.mxu0 %v1272
    %1783 = vmatprep.subr.bf16.mxu0 %v1265
    %1784 = vmatpush1.bf16.msra.mxu0 %v1264
    %1785 = vmatprep.subr.bf16.mxu0 %v1385
    %1786 = vmatpush2.bf16.msra.mxu0 %v1384
    %1787 = vmatprep.subr.bf16.mxu0 %v1377
    %1788 = vmatpush2.bf16.msra.mxu0 %v1376
    %1789 = vmatprep.subr.bf16.mxu0 %v1369
    %1790 = vmatpush2.bf16.msra.mxu0 %v1368
    %1791 = vmatprep.subr.bf16.mxu0 %v1361
    %1792 = vmatpush2.bf16.msra.mxu0 %v1360
    %1793 = vmatprep.subr.bf16.mxu0 %v1353
    %1794 = vmatpush2.bf16.msra.mxu0 %v1352
    %1795 = vmatprep.subr.bf16.mxu0 %v1345
    %1796 = vmatpush2.bf16.msra.mxu0 %v1344
    %1797 = vmatprep.subr.bf16.mxu0 %v1337
    %1798 = vmatpush2.bf16.msra.mxu0 %v1336
    %1799 = vmatprep.subr.bf16.mxu0 %v1329
    %1800 = vmatpush2.bf16.msra.mxu0 %v1328
    %1801 = vmatprep.mubr.bf16.mxu0 %v361
    %1802 = vmatmul.mubr.bf16.gmra.mxu0 %v360
    %v1803 = vpop.f32.mrf.mxu0
    %v1804 = vadd.f32 %v1763, %v1803
    %v1805 = vpop.f32.mrf.mxu0
    %v1806 = vadd.f32 %v1765, %v1805
    %v1807 = vpop.f32.mrf.mxu0
    %v1808 = vpop.f32.mrf.mxu0
    %1809 = vdwg.mxu0
    %1810 = vmatprep.subr.bf16.mxu0 %v1195
    %1811 = vmatpush1.bf16.msra.mxu0 %v1194
    %1812 = vmatprep.subr.bf16.mxu0 %v1187
    %1813 = vmatpush1.bf16.msra.mxu0 %v1186
    %1814 = vmatprep.subr.bf16.mxu0 %v1179
    %1815 = vmatpush1.bf16.msra.mxu0 %v1178
    %1816 = vmatprep.subr.bf16.mxu0 %v1171
    %1817 = vmatpush1.bf16.msra.mxu0 %v1170
    %1818 = vmatprep.subr.bf16.mxu0 %v1163
    %1819 = vmatpush1.bf16.msra.mxu0 %v1162
    %1820 = vmatprep.subr.bf16.mxu0 %v1155
    %1821 = vmatpush1.bf16.msra.mxu0 %v1154
    %1822 = vmatprep.subr.bf16.mxu0 %v1147
    %1823 = vmatpush1.bf16.msra.mxu0 %v1146
    %1824 = vmatprep.subr.bf16.mxu0 %v1139
    %1825 = vmatpush1.bf16.msra.mxu0 %v1138
    %1826 = vmatprep.subr.bf16.mxu0 %v1259
    %1827 = vmatpush2.bf16.msra.mxu0 %v1258
    %1828 = vmatprep.subr.bf16.mxu0 %v1251
    %1829 = vmatpush2.bf16.msra.mxu0 %v1250
    %1830 = vmatprep.subr.bf16.mxu0 %v1243
    %1831 = vmatpush2.bf16.msra.mxu0 %v1242
    %1832 = vmatprep.subr.bf16.mxu0 %v1235
    %1833 = vmatpush2.bf16.msra.mxu0 %v1234
    %1834 = vmatprep.subr.bf16.mxu0 %v1227
    %1835 = vmatpush2.bf16.msra.mxu0 %v1226
    %1836 = vmatprep.subr.bf16.mxu0 %v1219
    %1837 = vmatpush2.bf16.msra.mxu0 %v1218
    %1838 = vmatprep.subr.bf16.mxu0 %v1211
    %1839 = vmatpush2.bf16.msra.mxu0 %v1210
    %1840 = vmatprep.subr.bf16.mxu0 %v1203
    %1841 = vmatpush2.bf16.msra.mxu0 %v1202
    %1842 = vmatprep.mubr.bf16.mxu0 %v359
    %1843 = vmatmul.mubr.bf16.gmra.mxu0 %v352
    %v1844 = vpop.f32.mrf.mxu0
    %v1845 = vadd.f32 %v316, %v1844
    %v1846 = vpop.f32.mrf.mxu0
    %v1847 = vadd.f32 %v320, %v1846
    %v1848 = vpop.f32.mrf.mxu0
    %v1849 = vpop.f32.mrf.mxu0
    %1850 = vdwg.mxu0
    %1851 = vmatprep.subr.bf16.mxu0 %v1323
    %1852 = vmatpush1.bf16.msra.mxu0 %v1322
    %1853 = vmatprep.subr.bf16.mxu0 %v1315
    %1854 = vmatpush1.bf16.msra.mxu0 %v1314
    %1855 = vmatprep.subr.bf16.mxu0 %v1307
    %1856 = vmatpush1.bf16.msra.mxu0 %v1306
    %1857 = vmatprep.subr.bf16.mxu0 %v1299
    %1858 = vmatpush1.bf16.msra.mxu0 %v1298
    %1859 = vmatprep.subr.bf16.mxu0 %v1291
    %1860 = vmatpush1.bf16.msra.mxu0 %v1290
    %1861 = vmatprep.subr.bf16.mxu0 %v1283
    %1862 = vmatpush1.bf16.msra.mxu0 %v1282
    %1863 = vmatprep.subr.bf16.mxu0 %v1275
    %1864 = vmatpush1.bf16.msra.mxu0 %v1274
    %1865 = vmatprep.subr.bf16.mxu0 %v1267
    %1866 = vmatpush1.bf16.msra.mxu0 %v1266
    %1867 = vmatprep.subr.bf16.mxu0 %v1387
    %1868 = vmatpush2.bf16.msra.mxu0 %v1386
    %1869 = vmatprep.subr.bf16.mxu0 %v1379
    %1870 = vmatpush2.bf16.msra.mxu0 %v1378
    %1871 = vmatprep.subr.bf16.mxu0 %v1371
    %1872 = vmatpush2.bf16.msra.mxu0 %v1370
    %1873 = vmatprep.subr.bf16.mxu0 %v1363
    %1874 = vmatpush2.bf16.msra.mxu0 %v1362
    %1875 = vmatprep.subr.bf16.mxu0 %v1355
    %1876 = vmatpush2.bf16.msra.mxu0 %v1354
    %1877 = vmatprep.subr.bf16.mxu0 %v1347
    %1878 = vmatpush2.bf16.msra.mxu0 %v1346
    %1879 = vmatprep.subr.bf16.mxu0 %v1339
    %1880 = vmatpush2.bf16.msra.mxu0 %v1338
    %1881 = vmatprep.subr.bf16.mxu0 %v1331
    %1882 = vmatpush2.bf16.msra.mxu0 %v1330
    %1883 = vmatprep.mubr.bf16.mxu0 %v361
    %1884 = vmatmul.mubr.bf16.gmra.mxu0 %v360
    %v1885 = vpop.f32.mrf.mxu0
    %v1886 = vadd.f32 %v1845, %v1885
    %v1887 = vpop.f32.mrf.mxu0
    %v1888 = vadd.f32 %v1847, %v1887
    %v1889 = vpop.f32.mrf.mxu0
    %v1890 = vpop.f32.mrf.mxu0
    %1891 = vdwg.mxu0
    %1892 = vmatprep.subr.bf16.mxu0 %v1197
    %1893 = vmatpush1.bf16.msra.mxu0 %v1196
    %1894 = vmatprep.subr.bf16.mxu0 %v1189
    %1895 = vmatpush1.bf16.msra.mxu0 %v1188
    %1896 = vmatprep.subr.bf16.mxu0 %v1181
    %1897 = vmatpush1.bf16.msra.mxu0 %v1180
    %1898 = vmatprep.subr.bf16.mxu0 %v1173
    %1899 = vmatpush1.bf16.msra.mxu0 %v1172
    %1900 = vmatprep.subr.bf16.mxu0 %v1165
    %1901 = vmatpush1.bf16.msra.mxu0 %v1164
    %1902 = vmatprep.subr.bf16.mxu0 %v1157
    %1903 = vmatpush1.bf16.msra.mxu0 %v1156
    %1904 = vmatprep.subr.bf16.mxu0 %v1149
    %1905 = vmatpush1.bf16.msra.mxu0 %v1148
    %1906 = vmatprep.subr.bf16.mxu0 %v1141
    %1907 = vmatpush1.bf16.msra.mxu0 %v1140
    %1908 = vmatprep.subr.bf16.mxu0 %v1261
    %1909 = vmatpush2.bf16.msra.mxu0 %v1260
    %1910 = vmatprep.subr.bf16.mxu0 %v1253
    %1911 = vmatpush2.bf16.msra.mxu0 %v1252
    %1912 = vmatprep.subr.bf16.mxu0 %v1245
    %1913 = vmatpush2.bf16.msra.mxu0 %v1244
    %1914 = vmatprep.subr.bf16.mxu0 %v1237
    %1915 = vmatpush2.bf16.msra.mxu0 %v1236
    %1916 = vmatprep.subr.bf16.mxu0 %v1229
    %1917 = vmatpush2.bf16.msra.mxu0 %v1228
    %1918 = vmatprep.subr.bf16.mxu0 %v1221
    %1919 = vmatpush2.bf16.msra.mxu0 %v1220
    %1920 = vmatprep.subr.bf16.mxu0 %v1213
    %1921 = vmatpush2.bf16.msra.mxu0 %v1212
    %1922 = vmatprep.subr.bf16.mxu0 %v1205
    %1923 = vmatpush2.bf16.msra.mxu0 %v1204
    %1924 = vmatprep.mubr.bf16.mxu0 %v359
    %1925 = vmatmul.mubr.bf16.gmra.mxu0 %v352
    %v1926 = vpop.f32.mrf.mxu0
    %v1927 = vadd.f32 %v324, %v1926
    %v1928 = vpop.f32.mrf.mxu0
    %v1929 = vadd.f32 %v328, %v1928
    %v1930 = vpop.f32.mrf.mxu0
    %v1931 = vpop.f32.mrf.mxu0
    %1932 = vdwg.mxu0
    %1933 = vmatprep.subr.bf16.mxu0 %v1325
    %1934 = vmatpush1.bf16.msra.mxu0 %v1324
    %1935 = vmatprep.subr.bf16.mxu0 %v1317
    %1936 = vmatpush1.bf16.msra.mxu0 %v1316
    %1937 = vmatprep.subr.bf16.mxu0 %v1309
    %1938 = vmatpush1.bf16.msra.mxu0 %v1308
    %1939 = vmatprep.subr.bf16.mxu0 %v1301
    %1940 = vmatpush1.bf16.msra.mxu0 %v1300
    %1941 = vmatprep.subr.bf16.mxu0 %v1293
    %1942 = vmatpush1.bf16.msra.mxu0 %v1292
    %1943 = vmatprep.subr.bf16.mxu0 %v1285
    %1944 = vmatpush1.bf16.msra.mxu0 %v1284
    %1945 = vmatprep.subr.bf16.mxu0 %v1277
    %1946 = vmatpush1.bf16.msra.mxu0 %v1276
    %1947 = vmatprep.subr.bf16.mxu0 %v1269
    %1948 = vmatpush1.bf16.msra.mxu0 %v1268
    %1949 = vmatprep.subr.bf16.mxu0 %v1389
    %1950 = vmatpush2.bf16.msra.mxu0 %v1388
    %1951 = vmatprep.subr.bf16.mxu0 %v1381
    %1952 = vmatpush2.bf16.msra.mxu0 %v1380
    %1953 = vmatprep.subr.bf16.mxu0 %v1373
    %1954 = vmatpush2.bf16.msra.mxu0 %v1372
    %1955 = vmatprep.subr.bf16.mxu0 %v1365
    %1956 = vmatpush2.bf16.msra.mxu0 %v1364
    %1957 = vmatprep.subr.bf16.mxu0 %v1357
    %1958 = vmatpush2.bf16.msra.mxu0 %v1356
    %1959 = vmatprep.subr.bf16.mxu0 %v1349
    %1960 = vmatpush2.bf16.msra.mxu0 %v1348
    %1961 = vmatprep.subr.bf16.mxu0 %v1341
    %1962 = vmatpush2.bf16.msra.mxu0 %v1340
    %1963 = vmatprep.subr.bf16.mxu0 %v1333
    %1964 = vmatpush2.bf16.msra.mxu0 %v1332
    %1965 = vmatprep.mubr.bf16.mxu0 %v361
    %1966 = vmatmul.mubr.bf16.gmra.mxu0 %v360
    %v1967 = vpop.f32.mrf.mxu0
    %v1968 = vadd.f32 %v1927, %v1967
    %v1969 = vpop.f32.mrf.mxu0
    %v1970 = vadd.f32 %v1929, %v1969
    %v1971 = vpop.f32.mrf.mxu0
    %v1972 = vpop.f32.mrf.mxu0
    %1973 = vdwg.mxu0
    %v1974 = vmax.f32 %v1722, 0.0
    %v1975 = vmax.f32 %v1724, 0.0
    %v1976 = vmax.f32 %v1804, 0.0
    %v1977 = vmax.f32 %v1806, 0.0
    %v1978 = vmax.f32 %v1886, 0.0
    %v1979 = vmax.f32 %v1888, 0.0
    %v1980 = vmax.f32 %v1968, 0.0
    %v1981 = vmax.f32 %v1970, 0.0
    %v1982 = vpack.c.bf16 %v1974, %v1974
    %v1983 = vpack.c.bf16 %v1975, %v1975
    %v1984 = vpack.c.bf16 %v1976, %v1976
    %v1985 = vpack.c.bf16 %v1977, %v1977
    %v1986 = vpack.c.bf16 %v1978, %v1978
    %v1987 = vpack.c.bf16 %v1979, %v1979
    %v1988 = vpack.c.bf16 %v1980, %v1980
    %v1989 = vpack.c.bf16 %v1981, %v1981
    %v1990 = vld [vmem:[%s3] sm:$0xf]
    %v1991 = vld [vmem:[%s3 + $0x4] sm:$0xf]
    %v1992 = vld [vmem:[%s3 + $0x8] sm:$0xf]
    %v1993 = vld [vmem:[%s3 + $0xc] sm:$0xf]
    %v1994 = vld [vmem:[%s3 + $0x10] sm:$0xf]
    %v1995 = vld [vmem:[%s3 + $0x14] sm:$0xf]
    %v1996 = vld [vmem:[%s3 + $0x18] sm:$0xf]
    %v1997 = vld [vmem:[%s3 + $0x1c] sm:$0xf]
    %v1998 = vld [vmem:[%s3 + $0x20] sm:$0xf]
    %v1999 = vld [vmem:[%s3 + $0x24] sm:$0xf]
    %v2000 = vld [vmem:[%s3 + $0x28] sm:$0xf]
    %v2001 = vld [vmem:[%s3 + $0x2c] sm:$0xf]
    %v2002 = vld [vmem:[%s3 + $0x30] sm:$0xf]
    %v2003 = vld [vmem:[%s3 + $0x34] sm:$0xf]
    %v2004 = vld [vmem:[%s3 + $0x38] sm:$0xf]
    %v2005 = vld [vmem:[%s3 + $0x3c] sm:$0xf]
    %v2006 = vld [vmem:[%s3 + $0x40] sm:$0xf]
    %v2007 = vld [vmem:[%s3 + $0x44] sm:$0xf]
    %v2008 = vld [vmem:[%s3 + $0x48] sm:$0xf]
    %v2009 = vld [vmem:[%s3 + $0x4c] sm:$0xf]
    %v2010 = vld [vmem:[%s3 + $0x50] sm:$0xf]
    %v2011 = vld [vmem:[%s3 + $0x54] sm:$0xf]
    %v2012 = vld [vmem:[%s3 + $0x58] sm:$0xf]
    %v2013 = vld [vmem:[%s3 + $0x5c] sm:$0xf]
    %v2014 = vld [vmem:[%s3 + $0x60] sm:$0xf]
    %v2015 = vld [vmem:[%s3 + $0x64] sm:$0xf]
    %v2016 = vld [vmem:[%s3 + $0x68] sm:$0xf]
    %v2017 = vld [vmem:[%s3 + $0x6c] sm:$0xf]
    %v2018 = vld [vmem:[%s3 + $0x70] sm:$0xf]
    %v2019 = vld [vmem:[%s3 + $0x74] sm:$0xf]
    %v2020 = vld [vmem:[%s3 + $0x78] sm:$0xf]
    %v2021 = vld [vmem:[%s3 + $0x7c] sm:$0xf]
    %v2022 = vld [vmem:[%s3 + $0x80] sm:$0xf]
    %v2023 = vld [vmem:[%s3 + $0x84] sm:$0xf]
    %v2024 = vld [vmem:[%s3 + $0x88] sm:$0xf]
    %v2025 = vld [vmem:[%s3 + $0x8c] sm:$0xf]
    %v2026 = vld [vmem:[%s3 + $0x90] sm:$0xf]
    %v2027 = vld [vmem:[%s3 + $0x94] sm:$0xf]
    %v2028 = vld [vmem:[%s3 + $0x98] sm:$0xf]
    %v2029 = vld [vmem:[%s3 + $0x9c] sm:$0xf]
    %v2030 = vld [vmem:[%s3 + $0xa0] sm:$0xf]
    %v2031 = vld [vmem:[%s3 + $0xa4] sm:$0xf]
    %v2032 = vld [vmem:[%s3 + $0xa8] sm:$0xf]
    %v2033 = vld [vmem:[%s3 + $0xac] sm:$0xf]
    %v2034 = vld [vmem:[%s3 + $0xb0] sm:$0xf]
    %v2035 = vld [vmem:[%s3 + $0xb4] sm:$0xf]
    %v2036 = vld [vmem:[%s3 + $0xb8] sm:$0xf]
    %v2037 = vld [vmem:[%s3 + $0xbc] sm:$0xf]
    %v2038 = vld [vmem:[%s3 + $0xc0] sm:$0xf]
    %v2039 = vld [vmem:[%s3 + $0xc4] sm:$0xf]
    %v2040 = vld [vmem:[%s3 + $0xc8] sm:$0xf]
    %v2041 = vld [vmem:[%s3 + $0xcc] sm:$0xf]
    %v2042 = vld [vmem:[%s3 + $0xd0] sm:$0xf]
    %v2043 = vld [vmem:[%s3 + $0xd4] sm:$0xf]
    %v2044 = vld [vmem:[%s3 + $0xd8] sm:$0xf]
    %v2045 = vld [vmem:[%s3 + $0xdc] sm:$0xf]
    %v2046 = vld [vmem:[%s3 + $0xe0] sm:$0xf]
    %v2047 = vld [vmem:[%s3 + $0xe4] sm:$0xf]
    %v2048 = vld [vmem:[%s3 + $0xe8] sm:$0xf]
    %v2049 = vld [vmem:[%s3 + $0xec] sm:$0xf]
    %v2050 = vld [vmem:[%s3 + $0xf0] sm:$0xf]
    %v2051 = vld [vmem:[%s3 + $0xf4] sm:$0xf]
    %v2052 = vld [vmem:[%s3 + $0xf8] sm:$0xf]
    %v2053 = vld [vmem:[%s3 + $0xfc] sm:$0xf]
    %v2054 = vld [vmem:[%s4] sm:$0x1]
    %v2056 = vlaneseq
    %v2057 = vshrl.u32 %v2056, 7
    %v2058 = vsub.s32 0, %v2057
    %v2059 = vrot.slane %v2054, %v2058
    %v2125 = vunpack.c.l.b16 %v1990
    %v2126 = vunpack.c.l.b16 %v1991
    %v2127 = vunpack.c.l.b16 %v1992
    %v2128 = vunpack.c.l.b16 %v1993
    %v2129 = vunpack.c.l.b16 %v1994
    %v2130 = vunpack.c.l.b16 %v1995
    %v2131 = vunpack.c.l.b16 %v1996
    %v2132 = vunpack.c.l.b16 %v1997
    %v2133 = vunpack.c.l.b16 %v1998
    %v2134 = vunpack.c.l.b16 %v1999
    %v2135 = vunpack.c.l.b16 %v2000
    %v2136 = vunpack.c.l.b16 %v2001
    %v2137 = vunpack.c.l.b16 %v2002
    %v2138 = vunpack.c.l.b16 %v2003
    %v2139 = vunpack.c.l.b16 %v2004
    %v2140 = vunpack.c.l.b16 %v2005
    %v2141 = vunpack.c.l.b16 %v2006
    %v2142 = vunpack.c.l.b16 %v2007
    %v2143 = vunpack.c.l.b16 %v2008
    %v2144 = vunpack.c.l.b16 %v2009
    %v2145 = vunpack.c.l.b16 %v2010
    %v2146 = vunpack.c.l.b16 %v2011
    %v2147 = vunpack.c.l.b16 %v2012
    %v2148 = vunpack.c.l.b16 %v2013
    %v2149 = vunpack.c.l.b16 %v2014
    %v2150 = vunpack.c.l.b16 %v2015
    %v2151 = vunpack.c.l.b16 %v2016
    %v2152 = vunpack.c.l.b16 %v2017
    %v2153 = vunpack.c.l.b16 %v2018
    %v2154 = vunpack.c.l.b16 %v2019
    %v2155 = vunpack.c.l.b16 %v2020
    %v2156 = vunpack.c.l.b16 %v2021
    %v2157 = vunpack.c.l.b16 %v2022
    %v2158 = vunpack.c.l.b16 %v2023
    %v2159 = vunpack.c.l.b16 %v2024
    %v2160 = vunpack.c.l.b16 %v2025
    %v2161 = vunpack.c.l.b16 %v2026
    %v2162 = vunpack.c.l.b16 %v2027
    %v2163 = vunpack.c.l.b16 %v2028
    %v2164 = vunpack.c.l.b16 %v2029
    %v2165 = vunpack.c.l.b16 %v2030
    %v2166 = vunpack.c.l.b16 %v2031
    %v2167 = vunpack.c.l.b16 %v2032
    %v2168 = vunpack.c.l.b16 %v2033
    %v2169 = vunpack.c.l.b16 %v2034
    %v2170 = vunpack.c.l.b16 %v2035
    %v2171 = vunpack.c.l.b16 %v2036
    %v2172 = vunpack.c.l.b16 %v2037
    %v2173 = vunpack.c.l.b16 %v2038
    %v2174 = vunpack.c.l.b16 %v2039
    %v2175 = vunpack.c.l.b16 %v2040
    %v2176 = vunpack.c.l.b16 %v2041
    %v2177 = vunpack.c.l.b16 %v2042
    %v2178 = vunpack.c.l.b16 %v2043
    %v2179 = vunpack.c.l.b16 %v2044
    %v2180 = vunpack.c.l.b16 %v2045
    %v2181 = vunpack.c.l.b16 %v2046
    %v2182 = vunpack.c.l.b16 %v2047
    %v2183 = vunpack.c.l.b16 %v2048
    %v2184 = vunpack.c.l.b16 %v2049
    %v2185 = vunpack.c.l.b16 %v2050
    %v2186 = vunpack.c.l.b16 %v2051
    %v2187 = vunpack.c.l.b16 %v2052
    %v2188 = vunpack.c.l.b16 %v2053
    %v2189 = vpack.c.b16 %v2126, %v2125
    %v2190 = vpack.c.b16 %v2128, %v2127
    %v2191 = vpack.c.b16 %v2130, %v2129
    %v2192 = vpack.c.b16 %v2132, %v2131
    %v2193 = vpack.c.b16 %v2134, %v2133
    %v2194 = vpack.c.b16 %v2136, %v2135
    %v2195 = vpack.c.b16 %v2138, %v2137
    %v2196 = vpack.c.b16 %v2140, %v2139
    %v2197 = vpack.c.b16 %v2142, %v2141
    %v2198 = vpack.c.b16 %v2144, %v2143
    %v2199 = vpack.c.b16 %v2146, %v2145
    %v2200 = vpack.c.b16 %v2148, %v2147
    %v2201 = vpack.c.b16 %v2150, %v2149
    %v2202 = vpack.c.b16 %v2152, %v2151
    %v2203 = vpack.c.b16 %v2154, %v2153
    %v2204 = vpack.c.b16 %v2156, %v2155
    %v2205 = vpack.c.b16 %v2158, %v2157
    %v2206 = vpack.c.b16 %v2160, %v2159
    %v2207 = vpack.c.b16 %v2162, %v2161
    %v2208 = vpack.c.b16 %v2164, %v2163
    %v2209 = vpack.c.b16 %v2166, %v2165
    %v2210 = vpack.c.b16 %v2168, %v2167
    %v2211 = vpack.c.b16 %v2170, %v2169
    %v2212 = vpack.c.b16 %v2172, %v2171
    %v2213 = vpack.c.b16 %v2174, %v2173
    %v2214 = vpack.c.b16 %v2176, %v2175
    %v2215 = vpack.c.b16 %v2178, %v2177
    %v2216 = vpack.c.b16 %v2180, %v2179
    %v2217 = vpack.c.b16 %v2182, %v2181
    %v2218 = vpack.c.b16 %v2184, %v2183
    %v2219 = vpack.c.b16 %v2186, %v2185
    %v2220 = vpack.c.b16 %v2188, %v2187
    %2253 = vmatprep.subr.bf16.mxu0 0
    %2254 = vmatpush1.bf16.msra.mxu0 %v2196
    %2255 = vmatprep.subr.bf16.mxu0 0
    %2256 = vmatpush1.bf16.msra.mxu0 %v2195
    %2257 = vmatprep.subr.bf16.mxu0 0
    %2258 = vmatpush1.bf16.msra.mxu0 %v2194
    %2259 = vmatprep.subr.bf16.mxu0 0
    %2260 = vmatpush1.bf16.msra.mxu0 %v2193
    %2261 = vmatprep.subr.bf16.mxu0 0
    %2262 = vmatpush1.bf16.msra.mxu0 %v2192
    %2263 = vmatprep.subr.bf16.mxu0 0
    %2264 = vmatpush1.bf16.msra.mxu0 %v2191
    %2265 = vmatprep.subr.bf16.mxu0 0
    %2266 = vmatpush1.bf16.msra.mxu0 %v2190
    %2267 = vmatprep.subr.bf16.mxu0 0
    %2268 = vmatpush1.bf16.msra.mxu0 %v2189
    %2269 = vmatprep.subr.bf16.mxu0 0
    %2270 = vmatpush2.bf16.msra.mxu0 %v2204
    %2271 = vmatprep.subr.bf16.mxu0 0
    %2272 = vmatpush2.bf16.msra.mxu0 %v2203
    %2273 = vmatprep.subr.bf16.mxu0 0
    %2274 = vmatpush2.bf16.msra.mxu0 %v2202
    %2275 = vmatprep.subr.bf16.mxu0 0
    %2276 = vmatpush2.bf16.msra.mxu0 %v2201
    %2277 = vmatprep.subr.bf16.mxu0 0
    %2278 = vmatpush2.bf16.msra.mxu0 %v2200
    %2279 = vmatprep.subr.bf16.mxu0 0
    %2280 = vmatpush2.bf16.msra.mxu0 %v2199
    %2281 = vmatprep.subr.bf16.mxu0 0
    %2282 = vmatpush2.bf16.msra.mxu0 %v2198
    %2283 = vmatprep.subr.bf16.mxu0 0
    %2284 = vmatpush2.bf16.msra.mxu0 %v2197
    %2285 = vmatprep.mubr.bf16.mxu0 %v1983
    %2286 = vmatmul.mubr.bf16.gmra.mxu0 %v1982
    %v2287 = vpop.f32.mrf.mxu0
    %v2288 = vadd.f32 %v2059, %v2287
    %v2289 = vpop.f32.mrf.mxu0
    %v2290 = vpop.f32.mrf.mxu0
    %v2291 = vpop.f32.mrf.mxu0
    %2292 = vdwg.mxu0
    %2293 = vmatprep.subr.bf16.mxu0 0
    %2294 = vmatpush1.bf16.msra.mxu0 %v2212
    %2295 = vmatprep.subr.bf16.mxu0 0
    %2296 = vmatpush1.bf16.msra.mxu0 %v2211
    %2297 = vmatprep.subr.bf16.mxu0 0
    %2298 = vmatpush1.bf16.msra.mxu0 %v2210
    %2299 = vmatprep.subr.bf16.mxu0 0
    %2300 = vmatpush1.bf16.msra.mxu0 %v2209
    %2301 = vmatprep.subr.bf16.mxu0 0
    %2302 = vmatpush1.bf16.msra.mxu0 %v2208
    %2303 = vmatprep.subr.bf16.mxu0 0
    %2304 = vmatpush1.bf16.msra.mxu0 %v2207
    %2305 = vmatprep.subr.bf16.mxu0 0
    %2306 = vmatpush1.bf16.msra.mxu0 %v2206
    %2307 = vmatprep.subr.bf16.mxu0 0
    %2308 = vmatpush1.bf16.msra.mxu0 %v2205
    %2309 = vmatprep.subr.bf16.mxu0 0
    %2310 = vmatpush2.bf16.msra.mxu0 %v2220
    %2311 = vmatprep.subr.bf16.mxu0 0
    %2312 = vmatpush2.bf16.msra.mxu0 %v2219
    %2313 = vmatprep.subr.bf16.mxu0 0
    %2314 = vmatpush2.bf16.msra.mxu0 %v2218
    %2315 = vmatprep.subr.bf16.mxu0 0
    %2316 = vmatpush2.bf16.msra.mxu0 %v2217
    %2317 = vmatprep.subr.bf16.mxu0 0
    %2318 = vmatpush2.bf16.msra.mxu0 %v2216
    %2319 = vmatprep.subr.bf16.mxu0 0
    %2320 = vmatpush2.bf16.msra.mxu0 %v2215
    %2321 = vmatprep.subr.bf16.mxu0 0
    %2322 = vmatpush2.bf16.msra.mxu0 %v2214
    %2323 = vmatprep.subr.bf16.mxu0 0
    %2324 = vmatpush2.bf16.msra.mxu0 %v2213
    %2325 = vmatprep.mubr.bf16.mxu0 %v1985
    %2326 = vmatmul.mubr.bf16.gmra.mxu0 %v1984
    %v2327 = vpop.f32.mrf.mxu0
    %v2328 = vadd.f32 %v2288, %v2327
    %v2329 = vpop.f32.mrf.mxu0
    %v2330 = vpop.f32.mrf.mxu0
    %v2331 = vpop.f32.mrf.mxu0
    %2332 = vdwg.mxu0
    %s2333 = scalar_lea.vmem %s3, 256
    %v2334 = vld [vmem:[%s2333] sm:$0xf]
    %v2335 = vld [vmem:[%s2333 + $0x4] sm:$0xf]
    %v2336 = vld [vmem:[%s2333 + $0x8] sm:$0xf]
    %v2337 = vld [vmem:[%s2333 + $0xc] sm:$0xf]
    %v2338 = vld [vmem:[%s2333 + $0x10] sm:$0xf]
    %v2339 = vld [vmem:[%s2333 + $0x14] sm:$0xf]
    %v2340 = vld [vmem:[%s2333 + $0x18] sm:$0xf]
    %v2341 = vld [vmem:[%s2333 + $0x1c] sm:$0xf]
    %v2342 = vld [vmem:[%s2333 + $0x20] sm:$0xf]
    %v2343 = vld [vmem:[%s2333 + $0x24] sm:$0xf]
    %v2344 = vld [vmem:[%s2333 + $0x28] sm:$0xf]
    %v2345 = vld [vmem:[%s2333 + $0x2c] sm:$0xf]
    %v2346 = vld [vmem:[%s2333 + $0x30] sm:$0xf]
    %v2347 = vld [vmem:[%s2333 + $0x34] sm:$0xf]
    %v2348 = vld [vmem:[%s2333 + $0x38] sm:$0xf]
    %v2349 = vld [vmem:[%s2333 + $0x3c] sm:$0xf]
    %v2350 = vld [vmem:[%s2333 + $0x40] sm:$0xf]
    %v2351 = vld [vmem:[%s2333 + $0x44] sm:$0xf]
    %v2352 = vld [vmem:[%s2333 + $0x48] sm:$0xf]
    %v2353 = vld [vmem:[%s2333 + $0x4c] sm:$0xf]
    %v2354 = vld [vmem:[%s2333 + $0x50] sm:$0xf]
    %v2355 = vld [vmem:[%s2333 + $0x54] sm:$0xf]
    %v2356 = vld [vmem:[%s2333 + $0x58] sm:$0xf]
    %v2357 = vld [vmem:[%s2333 + $0x5c] sm:$0xf]
    %v2358 = vld [vmem:[%s2333 + $0x60] sm:$0xf]
    %v2359 = vld [vmem:[%s2333 + $0x64] sm:$0xf]
    %v2360 = vld [vmem:[%s2333 + $0x68] sm:$0xf]
    %v2361 = vld [vmem:[%s2333 + $0x6c] sm:$0xf]
    %v2362 = vld [vmem:[%s2333 + $0x70] sm:$0xf]
    %v2363 = vld [vmem:[%s2333 + $0x74] sm:$0xf]
    %v2364 = vld [vmem:[%s2333 + $0x78] sm:$0xf]
    %v2365 = vld [vmem:[%s2333 + $0x7c] sm:$0xf]
    %v2366 = vld [vmem:[%s2333 + $0x80] sm:$0xf]
    %v2367 = vld [vmem:[%s2333 + $0x84] sm:$0xf]
    %v2368 = vld [vmem:[%s2333 + $0x88] sm:$0xf]
    %v2369 = vld [vmem:[%s2333 + $0x8c] sm:$0xf]
    %v2370 = vld [vmem:[%s2333 + $0x90] sm:$0xf]
    %v2371 = vld [vmem:[%s2333 + $0x94] sm:$0xf]
    %v2372 = vld [vmem:[%s2333 + $0x98] sm:$0xf]
    %v2373 = vld [vmem:[%s2333 + $0x9c] sm:$0xf]
    %v2374 = vld [vmem:[%s2333 + $0xa0] sm:$0xf]
    %v2375 = vld [vmem:[%s2333 + $0xa4] sm:$0xf]
    %v2376 = vld [vmem:[%s2333 + $0xa8] sm:$0xf]
    %v2377 = vld [vmem:[%s2333 + $0xac] sm:$0xf]
    %v2378 = vld [vmem:[%s2333 + $0xb0] sm:$0xf]
    %v2379 = vld [vmem:[%s2333 + $0xb4] sm:$0xf]
    %v2380 = vld [vmem:[%s2333 + $0xb8] sm:$0xf]
    %v2381 = vld [vmem:[%s2333 + $0xbc] sm:$0xf]
    %v2382 = vld [vmem:[%s2333 + $0xc0] sm:$0xf]
    %v2383 = vld [vmem:[%s2333 + $0xc4] sm:$0xf]
    %v2384 = vld [vmem:[%s2333 + $0xc8] sm:$0xf]
    %v2385 = vld [vmem:[%s2333 + $0xcc] sm:$0xf]
    %v2386 = vld [vmem:[%s2333 + $0xd0] sm:$0xf]
    %v2387 = vld [vmem:[%s2333 + $0xd4] sm:$0xf]
    %v2388 = vld [vmem:[%s2333 + $0xd8] sm:$0xf]
    %v2389 = vld [vmem:[%s2333 + $0xdc] sm:$0xf]
    %v2390 = vld [vmem:[%s2333 + $0xe0] sm:$0xf]
    %v2391 = vld [vmem:[%s2333 + $0xe4] sm:$0xf]
    %v2392 = vld [vmem:[%s2333 + $0xe8] sm:$0xf]
    %v2393 = vld [vmem:[%s2333 + $0xec] sm:$0xf]
    %v2394 = vld [vmem:[%s2333 + $0xf0] sm:$0xf]
    %v2395 = vld [vmem:[%s2333 + $0xf4] sm:$0xf]
    %v2396 = vld [vmem:[%s2333 + $0xf8] sm:$0xf]
    %v2397 = vld [vmem:[%s2333 + $0xfc] sm:$0xf]
    %s2398 = scalar_lea.vmem %s4, 1
    %v2399 = vld [vmem:[%s2398] sm:$0x1]
    %v2401 = vlaneseq
    %v2402 = vshrl.u32 %v2401, 7
    %v2403 = vsub.s32 0, %v2402
    %v2404 = vrot.slane %v2399, %v2403
    %v2470 = vunpack.c.l.b16 %v2334
    %v2471 = vunpack.c.l.b16 %v2335
    %v2472 = vunpack.c.l.b16 %v2336
    %v2473 = vunpack.c.l.b16 %v2337
    %v2474 = vunpack.c.l.b16 %v2338
    %v2475 = vunpack.c.l.b16 %v2339
    %v2476 = vunpack.c.l.b16 %v2340
    %v2477 = vunpack.c.l.b16 %v2341
    %v2478 = vunpack.c.l.b16 %v2342
    %v2479 = vunpack.c.l.b16 %v2343
    %v2480 = vunpack.c.l.b16 %v2344
    %v2481 = vunpack.c.l.b16 %v2345
    %v2482 = vunpack.c.l.b16 %v2346
    %v2483 = vunpack.c.l.b16 %v2347
    %v2484 = vunpack.c.l.b16 %v2348
    %v2485 = vunpack.c.l.b16 %v2349
    %v2486 = vunpack.c.l.b16 %v2350
    %v2487 = vunpack.c.l.b16 %v2351
    %v2488 = vunpack.c.l.b16 %v2352
    %v2489 = vunpack.c.l.b16 %v2353
    %v2490 = vunpack.c.l.b16 %v2354
    %v2491 = vunpack.c.l.b16 %v2355
    %v2492 = vunpack.c.l.b16 %v2356
    %v2493 = vunpack.c.l.b16 %v2357
    %v2494 = vunpack.c.l.b16 %v2358
    %v2495 = vunpack.c.l.b16 %v2359
    %v2496 = vunpack.c.l.b16 %v2360
    %v2497 = vunpack.c.l.b16 %v2361
    %v2498 = vunpack.c.l.b16 %v2362
    %v2499 = vunpack.c.l.b16 %v2363
    %v2500 = vunpack.c.l.b16 %v2364
    %v2501 = vunpack.c.l.b16 %v2365
    %v2502 = vunpack.c.l.b16 %v2366
    %v2503 = vunpack.c.l.b16 %v2367
    %v2504 = vunpack.c.l.b16 %v2368
    %v2505 = vunpack.c.l.b16 %v2369
    %v2506 = vunpack.c.l.b16 %v2370
    %v2507 = vunpack.c.l.b16 %v2371
    %v2508 = vunpack.c.l.b16 %v2372
    %v2509 = vunpack.c.l.b16 %v2373
    %v2510 = vunpack.c.l.b16 %v2374
    %v2511 = vunpack.c.l.b16 %v2375
    %v2512 = vunpack.c.l.b16 %v2376
    %v2513 = vunpack.c.l.b16 %v2377
    %v2514 = vunpack.c.l.b16 %v2378
    %v2515 = vunpack.c.l.b16 %v2379
    %v2516 = vunpack.c.l.b16 %v2380
    %v2517 = vunpack.c.l.b16 %v2381
    %v2518 = vunpack.c.l.b16 %v2382
    %v2519 = vunpack.c.l.b16 %v2383
    %v2520 = vunpack.c.l.b16 %v2384
    %v2521 = vunpack.c.l.b16 %v2385
    %v2522 = vunpack.c.l.b16 %v2386
    %v2523 = vunpack.c.l.b16 %v2387
    %v2524 = vunpack.c.l.b16 %v2388
    %v2525 = vunpack.c.l.b16 %v2389
    %v2526 = vunpack.c.l.b16 %v2390
    %v2527 = vunpack.c.l.b16 %v2391
    %v2528 = vunpack.c.l.b16 %v2392
    %v2529 = vunpack.c.l.b16 %v2393
    %v2530 = vunpack.c.l.b16 %v2394
    %v2531 = vunpack.c.l.b16 %v2395
    %v2532 = vunpack.c.l.b16 %v2396
    %v2533 = vunpack.c.l.b16 %v2397
    %v2534 = vpack.c.b16 %v2471, %v2470
    %v2535 = vpack.c.b16 %v2473, %v2472
    %v2536 = vpack.c.b16 %v2475, %v2474
    %v2537 = vpack.c.b16 %v2477, %v2476
    %v2538 = vpack.c.b16 %v2479, %v2478
    %v2539 = vpack.c.b16 %v2481, %v2480
    %v2540 = vpack.c.b16 %v2483, %v2482
    %v2541 = vpack.c.b16 %v2485, %v2484
    %v2542 = vpack.c.b16 %v2487, %v2486
    %v2543 = vpack.c.b16 %v2489, %v2488
    %v2544 = vpack.c.b16 %v2491, %v2490
    %v2545 = vpack.c.b16 %v2493, %v2492
    %v2546 = vpack.c.b16 %v2495, %v2494
    %v2547 = vpack.c.b16 %v2497, %v2496
    %v2548 = vpack.c.b16 %v2499, %v2498
    %v2549 = vpack.c.b16 %v2501, %v2500
    %v2550 = vpack.c.b16 %v2503, %v2502
    %v2551 = vpack.c.b16 %v2505, %v2504
    %v2552 = vpack.c.b16 %v2507, %v2506
    %v2553 = vpack.c.b16 %v2509, %v2508
    %v2554 = vpack.c.b16 %v2511, %v2510
    %v2555 = vpack.c.b16 %v2513, %v2512
    %v2556 = vpack.c.b16 %v2515, %v2514
    %v2557 = vpack.c.b16 %v2517, %v2516
    %v2558 = vpack.c.b16 %v2519, %v2518
    %v2559 = vpack.c.b16 %v2521, %v2520
    %v2560 = vpack.c.b16 %v2523, %v2522
    %v2561 = vpack.c.b16 %v2525, %v2524
    %v2562 = vpack.c.b16 %v2527, %v2526
    %v2563 = vpack.c.b16 %v2529, %v2528
    %v2564 = vpack.c.b16 %v2531, %v2530
    %v2565 = vpack.c.b16 %v2533, %v2532
    %2598 = vmatprep.subr.bf16.mxu0 0
    %2599 = vmatpush1.bf16.msra.mxu0 %v2541
    %2600 = vmatprep.subr.bf16.mxu0 0
    %2601 = vmatpush1.bf16.msra.mxu0 %v2540
    %2602 = vmatprep.subr.bf16.mxu0 0
    %2603 = vmatpush1.bf16.msra.mxu0 %v2539
    %2604 = vmatprep.subr.bf16.mxu0 0
    %2605 = vmatpush1.bf16.msra.mxu0 %v2538
    %2606 = vmatprep.subr.bf16.mxu0 0
    %2607 = vmatpush1.bf16.msra.mxu0 %v2537
    %2608 = vmatprep.subr.bf16.mxu0 0
    %2609 = vmatpush1.bf16.msra.mxu0 %v2536
    %2610 = vmatprep.subr.bf16.mxu0 0
    %2611 = vmatpush1.bf16.msra.mxu0 %v2535
    %2612 = vmatprep.subr.bf16.mxu0 0
    %2613 = vmatpush1.bf16.msra.mxu0 %v2534
    %2614 = vmatprep.subr.bf16.mxu0 0
    %2615 = vmatpush2.bf16.msra.mxu0 %v2549
    %2616 = vmatprep.subr.bf16.mxu0 0
    %2617 = vmatpush2.bf16.msra.mxu0 %v2548
    %2618 = vmatprep.subr.bf16.mxu0 0
    %2619 = vmatpush2.bf16.msra.mxu0 %v2547
    %2620 = vmatprep.subr.bf16.mxu0 0
    %2621 = vmatpush2.bf16.msra.mxu0 %v2546
    %2622 = vmatprep.subr.bf16.mxu0 0
    %2623 = vmatpush2.bf16.msra.mxu0 %v2545
    %2624 = vmatprep.subr.bf16.mxu0 0
    %2625 = vmatpush2.bf16.msra.mxu0 %v2544
    %2626 = vmatprep.subr.bf16.mxu0 0
    %2627 = vmatpush2.bf16.msra.mxu0 %v2543
    %2628 = vmatprep.subr.bf16.mxu0 0
    %2629 = vmatpush2.bf16.msra.mxu0 %v2542
    %2630 = vmatprep.mubr.bf16.mxu0 %v1987
    %2631 = vmatmul.mubr.bf16.gmra.mxu0 %v1986
    %v2632 = vpop.f32.mrf.mxu0
    %v2633 = vadd.f32 %v2404, %v2632
    %v2634 = vpop.f32.mrf.mxu0
    %v2635 = vpop.f32.mrf.mxu0
    %v2636 = vpop.f32.mrf.mxu0
    %2637 = vdwg.mxu0
    %2638 = vmatprep.subr.bf16.mxu0 0
    %2639 = vmatpush1.bf16.msra.mxu0 %v2557
    %2640 = vmatprep.subr.bf16.mxu0 0
    %2641 = vmatpush1.bf16.msra.mxu0 %v2556
    %2642 = vmatprep.subr.bf16.mxu0 0
    %2643 = vmatpush1.bf16.msra.mxu0 %v2555
    %2644 = vmatprep.subr.bf16.mxu0 0
    %2645 = vmatpush1.bf16.msra.mxu0 %v2554
    %2646 = vmatprep.subr.bf16.mxu0 0
    %2647 = vmatpush1.bf16.msra.mxu0 %v2553
    %2648 = vmatprep.subr.bf16.mxu0 0
    %2649 = vmatpush1.bf16.msra.mxu0 %v2552
    %2650 = vmatprep.subr.bf16.mxu0 0
    %2651 = vmatpush1.bf16.msra.mxu0 %v2551
    %2652 = vmatprep.subr.bf16.mxu0 0
    %2653 = vmatpush1.bf16.msra.mxu0 %v2550
    %2654 = vmatprep.subr.bf16.mxu0 0
    %2655 = vmatpush2.bf16.msra.mxu0 %v2565
    %2656 = vmatprep.subr.bf16.mxu0 0
    %2657 = vmatpush2.bf16.msra.mxu0 %v2564
    %2658 = vmatprep.subr.bf16.mxu0 0
    %2659 = vmatpush2.bf16.msra.mxu0 %v2563
    %2660 = vmatprep.subr.bf16.mxu0 0
    %2661 = vmatpush2.bf16.msra.mxu0 %v2562
    %2662 = vmatprep.subr.bf16.mxu0 0
    %2663 = vmatpush2.bf16.msra.mxu0 %v2561
    %2664 = vmatprep.subr.bf16.mxu0 0
    %2665 = vmatpush2.bf16.msra.mxu0 %v2560
    %2666 = vmatprep.subr.bf16.mxu0 0
    %2667 = vmatpush2.bf16.msra.mxu0 %v2559
    %2668 = vmatprep.subr.bf16.mxu0 0
    %2669 = vmatpush2.bf16.msra.mxu0 %v2558
    %2670 = vmatprep.mubr.bf16.mxu0 %v1989
    %2671 = vmatmul.mubr.bf16.gmra.mxu0 %v1988
    %v2672 = vpop.f32.mrf.mxu0
    %v2673 = vadd.f32 %v2633, %v2672
    %v2674 = vpop.f32.mrf.mxu0
    %v2675 = vpop.f32.mrf.mxu0
    %v2676 = vpop.f32.mrf.mxu0
    %2677 = vdwg.mxu0
    %v2678 = vlaneseq
    %v2679 = vshrl.u32 %v2678, 7
    %v2680 = vsub.s32 0, %v2679
    %v2681 = vrot.slane %v2328, %v2680
    %2683 = vbcast.lane.b32.xlu0 %v2681, 256
    %v2684 = vpop.permute.xlu0 %2683
    %s2686 = sor.u32 256, 8
    %2687 = vbcast.lane.b32.xlu0 %v2681, %s2686
    %v2688 = vpop.permute.xlu0 %2687
    %s2690 = sor.u32 256, 16
    %2691 = vbcast.lane.b32.xlu0 %v2681, %s2690
    %v2692 = vpop.permute.xlu0 %2691
    %s2694 = sor.u32 256, 24
    %2695 = vbcast.lane.b32.xlu0 %v2681, %s2694
    %v2696 = vpop.permute.xlu0 %2695
    %s2698 = sor.u32 256, 32
    %2699 = vbcast.lane.b32.xlu0 %v2681, %s2698
    %v2700 = vpop.permute.xlu0 %2699
    %s2702 = sor.u32 256, 40
    %2703 = vbcast.lane.b32.xlu0 %v2681, %s2702
    %v2704 = vpop.permute.xlu0 %2703
    %s2706 = sor.u32 256, 48
    %2707 = vbcast.lane.b32.xlu0 %v2681, %s2706
    %v2708 = vpop.permute.xlu0 %2707
    %s2710 = sor.u32 256, 56
    %2711 = vbcast.lane.b32.xlu0 %v2681, %s2710
    %v2712 = vpop.permute.xlu0 %2711
    %v2713 = vlaneseq
    %v2714 = vshrl.u32 %v2713, 7
    %v2715 = vsub.s32 1, %v2714
    %v2716 = vrot.slane %v2328, %v2715
    %2718 = vbcast.lane.b32.xlu0 %v2716, 256
    %v2719 = vpop.permute.xlu0 %2718
    %s2721 = sor.u32 256, 8
    %2722 = vbcast.lane.b32.xlu0 %v2716, %s2721
    %v2723 = vpop.permute.xlu0 %2722
    %s2725 = sor.u32 256, 16
    %2726 = vbcast.lane.b32.xlu0 %v2716, %s2725
    %v2727 = vpop.permute.xlu0 %2726
    %s2729 = sor.u32 256, 24
    %2730 = vbcast.lane.b32.xlu0 %v2716, %s2729
    %v2731 = vpop.permute.xlu0 %2730
    %s2733 = sor.u32 256, 32
    %2734 = vbcast.lane.b32.xlu0 %v2716, %s2733
    %v2735 = vpop.permute.xlu0 %2734
    %s2737 = sor.u32 256, 40
    %2738 = vbcast.lane.b32.xlu0 %v2716, %s2737
    %v2739 = vpop.permute.xlu0 %2738
    %s2741 = sor.u32 256, 48
    %2742 = vbcast.lane.b32.xlu0 %v2716, %s2741
    %v2743 = vpop.permute.xlu0 %2742
    %s2745 = sor.u32 256, 56
    %2746 = vbcast.lane.b32.xlu0 %v2716, %s2745
    %v2747 = vpop.permute.xlu0 %2746
    %v2748 = vld [vmem:[%s5] sm:$0xff]
    %v2749 = vld [vmem:[%s5 + $0x8] sm:$0xff]
    %v2750 = vld [vmem:[%s5 + $0x10] sm:$0xff]
    %v2751 = vld [vmem:[%s5 + $0x18] sm:$0xff]
    %v2752 = vld [vmem:[%s5 + $0x20] sm:$0xff]
    %v2753 = vld [vmem:[%s5 + $0x28] sm:$0xff]
    %v2754 = vld [vmem:[%s5 + $0x30] sm:$0xff]
    %v2755 = vld [vmem:[%s5 + $0x38] sm:$0xff]
    %v2756 = vld [vmem:[%s5 + $0x40] sm:$0xff]
    %v2757 = vld [vmem:[%s5 + $0x48] sm:$0xff]
    %v2758 = vld [vmem:[%s5 + $0x50] sm:$0xff]
    %v2759 = vld [vmem:[%s5 + $0x58] sm:$0xff]
    %v2760 = vld [vmem:[%s5 + $0x60] sm:$0xff]
    %v2761 = vld [vmem:[%s5 + $0x68] sm:$0xff]
    %v2762 = vld [vmem:[%s5 + $0x70] sm:$0xff]
    %v2763 = vld [vmem:[%s5 + $0x78] sm:$0xff]
    %v2764 = vld [vmem:[%s5 + $0x80] sm:$0xff]
    %v2765 = vld [vmem:[%s5 + $0x88] sm:$0xff]
    %v2766 = vld [vmem:[%s5 + $0x90] sm:$0xff]
    %v2767 = vld [vmem:[%s5 + $0x98] sm:$0xff]
    %v2768 = vld [vmem:[%s5 + $0xa0] sm:$0xff]
    %v2769 = vld [vmem:[%s5 + $0xa8] sm:$0xff]
    %v2770 = vld [vmem:[%s5 + $0xb0] sm:$0xff]
    %v2771 = vld [vmem:[%s5 + $0xb8] sm:$0xff]
    %v2772 = vld [vmem:[%s5 + $0xc0] sm:$0xff]
    %v2773 = vld [vmem:[%s5 + $0xc8] sm:$0xff]
    %v2774 = vld [vmem:[%s5 + $0xd0] sm:$0xff]
    %v2775 = vld [vmem:[%s5 + $0xd8] sm:$0xff]
    %v2776 = vld [vmem:[%s5 + $0xe0] sm:$0xff]
    %v2777 = vld [vmem:[%s5 + $0xe8] sm:$0xff]
    %v2778 = vld [vmem:[%s5 + $0xf0] sm:$0xff]
    %v2779 = vld [vmem:[%s5 + $0xf8] sm:$0xff]
    %v2780 = vmul.f32 %v2684, %v2748
    %v2781 = vmul.f32 %v2684, %v2749
    %v2782 = vmul.f32 %v2688, %v2750
    %v2783 = vmul.f32 %v2688, %v2751
    %v2784 = vmul.f32 %v2692, %v2752
    %v2785 = vmul.f32 %v2692, %v2753
    %v2786 = vmul.f32 %v2696, %v2754
    %v2787 = vmul.f32 %v2696, %v2755
    %v2788 = vmul.f32 %v2700, %v2756
    %v2789 = vmul.f32 %v2700, %v2757
    %v2790 = vmul.f32 %v2704, %v2758
    %v2791 = vmul.f32 %v2704, %v2759
    %v2792 = vmul.f32 %v2708, %v2760
    %v2793 = vmul.f32 %v2708, %v2761
    %v2794 = vmul.f32 %v2712, %v2762
    %v2795 = vmul.f32 %v2712, %v2763
    %v2796 = vmul.f32 %v2719, %v2764
    %v2797 = vmul.f32 %v2719, %v2765
    %v2798 = vmul.f32 %v2723, %v2766
    %v2799 = vmul.f32 %v2723, %v2767
    %v2800 = vmul.f32 %v2727, %v2768
    %v2801 = vmul.f32 %v2727, %v2769
    %v2802 = vmul.f32 %v2731, %v2770
    %v2803 = vmul.f32 %v2731, %v2771
    %v2804 = vmul.f32 %v2735, %v2772
    %v2805 = vmul.f32 %v2735, %v2773
    %v2806 = vmul.f32 %v2739, %v2774
    %v2807 = vmul.f32 %v2739, %v2775
    %v2808 = vmul.f32 %v2743, %v2776
    %v2809 = vmul.f32 %v2743, %v2777
    %v2810 = vmul.f32 %v2747, %v2778
    %v2811 = vmul.f32 %v2747, %v2779
    %v2812 = vlaneseq
    %v2813 = vshrl.u32 %v2812, 7
    %v2814 = vsub.s32 0, %v2813
    %v2815 = vrot.slane %v2673, %v2814
    %2817 = vbcast.lane.b32.xlu0 %v2815, 256
    %v2818 = vpop.permute.xlu0 %2817
    %s2820 = sor.u32 256, 8
    %2821 = vbcast.lane.b32.xlu0 %v2815, %s2820
    %v2822 = vpop.permute.xlu0 %2821
    %s2824 = sor.u32 256, 16
    %2825 = vbcast.lane.b32.xlu0 %v2815, %s2824
    %v2826 = vpop.permute.xlu0 %2825
    %s2828 = sor.u32 256, 24
    %2829 = vbcast.lane.b32.xlu0 %v2815, %s2828
    %v2830 = vpop.permute.xlu0 %2829
    %s2832 = sor.u32 256, 32
    %2833 = vbcast.lane.b32.xlu0 %v2815, %s2832
    %v2834 = vpop.permute.xlu0 %2833
    %s2836 = sor.u32 256, 40
    %2837 = vbcast.lane.b32.xlu0 %v2815, %s2836
    %v2838 = vpop.permute.xlu0 %2837
    %s2840 = sor.u32 256, 48
    %2841 = vbcast.lane.b32.xlu0 %v2815, %s2840
    %v2842 = vpop.permute.xlu0 %2841
    %s2844 = sor.u32 256, 56
    %2845 = vbcast.lane.b32.xlu0 %v2815, %s2844
    %v2846 = vpop.permute.xlu0 %2845
    %v2847 = vlaneseq
    %v2848 = vshrl.u32 %v2847, 7
    %v2849 = vsub.s32 1, %v2848
    %v2850 = vrot.slane %v2673, %v2849
    %2852 = vbcast.lane.b32.xlu0 %v2850, 256
    %v2853 = vpop.permute.xlu0 %2852
    %s2855 = sor.u32 256, 8
    %2856 = vbcast.lane.b32.xlu0 %v2850, %s2855
    %v2857 = vpop.permute.xlu0 %2856
    %s2859 = sor.u32 256, 16
    %2860 = vbcast.lane.b32.xlu0 %v2850, %s2859
    %v2861 = vpop.permute.xlu0 %2860
    %s2863 = sor.u32 256, 24
    %2864 = vbcast.lane.b32.xlu0 %v2850, %s2863
    %v2865 = vpop.permute.xlu0 %2864
    %s2867 = sor.u32 256, 32
    %2868 = vbcast.lane.b32.xlu0 %v2850, %s2867
    %v2869 = vpop.permute.xlu0 %2868
    %s2871 = sor.u32 256, 40
    %2872 = vbcast.lane.b32.xlu0 %v2850, %s2871
    %v2873 = vpop.permute.xlu0 %2872
    %s2875 = sor.u32 256, 48
    %2876 = vbcast.lane.b32.xlu0 %v2850, %s2875
    %v2877 = vpop.permute.xlu0 %2876
    %s2879 = sor.u32 256, 56
    %2880 = vbcast.lane.b32.xlu0 %v2850, %s2879
    %v2881 = vpop.permute.xlu0 %2880
    %v2882 = vadd.f32 %v2780, %v2818
    %v2883 = vadd.f32 %v2781, %v2818
    %v2884 = vadd.f32 %v2782, %v2822
    %v2885 = vadd.f32 %v2783, %v2822
    %v2886 = vadd.f32 %v2784, %v2826
    %v2887 = vadd.f32 %v2785, %v2826
    %v2888 = vadd.f32 %v2786, %v2830
    %v2889 = vadd.f32 %v2787, %v2830
    %v2890 = vadd.f32 %v2788, %v2834
    %v2891 = vadd.f32 %v2789, %v2834
    %v2892 = vadd.f32 %v2790, %v2838
    %v2893 = vadd.f32 %v2791, %v2838
    %v2894 = vadd.f32 %v2792, %v2842
    %v2895 = vadd.f32 %v2793, %v2842
    %v2896 = vadd.f32 %v2794, %v2846
    %v2897 = vadd.f32 %v2795, %v2846
    %v2898 = vadd.f32 %v2796, %v2853
    %v2899 = vadd.f32 %v2797, %v2853
    %v2900 = vadd.f32 %v2798, %v2857
    %v2901 = vadd.f32 %v2799, %v2857
    %v2902 = vadd.f32 %v2800, %v2861
    %v2903 = vadd.f32 %v2801, %v2861
    %v2904 = vadd.f32 %v2802, %v2865
    %v2905 = vadd.f32 %v2803, %v2865
    %v2906 = vadd.f32 %v2804, %v2869
    %v2907 = vadd.f32 %v2805, %v2869
    %v2908 = vadd.f32 %v2806, %v2873
    %v2909 = vadd.f32 %v2807, %v2873
    %v2910 = vadd.f32 %v2808, %v2877
    %v2911 = vadd.f32 %v2809, %v2877
    %v2912 = vadd.f32 %v2810, %v2881
    %v2913 = vadd.f32 %v2811, %v2881
    %2914 = vst [vmem:[%s6] sm:$0xff] %v2882
    %2915 = vst [vmem:[%s6 + $0x8] sm:$0xff] %v2883
    %2916 = vst [vmem:[%s6 + $0x10] sm:$0xff] %v2884
    %2917 = vst [vmem:[%s6 + $0x18] sm:$0xff] %v2885
    %2918 = vst [vmem:[%s6 + $0x20] sm:$0xff] %v2886
    %2919 = vst [vmem:[%s6 + $0x28] sm:$0xff] %v2887
    %2920 = vst [vmem:[%s6 + $0x30] sm:$0xff] %v2888
    %2921 = vst [vmem:[%s6 + $0x38] sm:$0xff] %v2889
    %2922 = vst [vmem:[%s6 + $0x40] sm:$0xff] %v2890
    %2923 = vst [vmem:[%s6 + $0x48] sm:$0xff] %v2891
    %2924 = vst [vmem:[%s6 + $0x50] sm:$0xff] %v2892
    %2925 = vst [vmem:[%s6 + $0x58] sm:$0xff] %v2893
    %2926 = vst [vmem:[%s6 + $0x60] sm:$0xff] %v2894
    %2927 = vst [vmem:[%s6 + $0x68] sm:$0xff] %v2895
    %2928 = vst [vmem:[%s6 + $0x70] sm:$0xff] %v2896
    %2929 = vst [vmem:[%s6 + $0x78] sm:$0xff] %v2897
    %2930 = vst [vmem:[%s6 + $0x80] sm:$0xff] %v2898
    %2931 = vst [vmem:[%s6 + $0x88] sm:$0xff] %v2899
    %2932 = vst [vmem:[%s6 + $0x90] sm:$0xff] %v2900
    %2933 = vst [vmem:[%s6 + $0x98] sm:$0xff] %v2901
    %2934 = vst [vmem:[%s6 + $0xa0] sm:$0xff] %v2902
    %2935 = vst [vmem:[%s6 + $0xa8] sm:$0xff] %v2903
    %2936 = vst [vmem:[%s6 + $0xb0] sm:$0xff] %v2904
    %2937 = vst [vmem:[%s6 + $0xb8] sm:$0xff] %v2905
    %2938 = vst [vmem:[%s6 + $0xc0] sm:$0xff] %v2906
    %2939 = vst [vmem:[%s6 + $0xc8] sm:$0xff] %v2907
    %2940 = vst [vmem:[%s6 + $0xd0] sm:$0xff] %v2908
    %2941 = vst [vmem:[%s6 + $0xd8] sm:$0xff] %v2909
    %2942 = vst [vmem:[%s6 + $0xe0] sm:$0xff] %v2910
    %2943 = vst [vmem:[%s6 + $0xe8] sm:$0xff] %v2911
    %2944 = vst [vmem:[%s6 + $0xf0] sm:$0xff] %v2912
    %2945 = vst [vmem:[%s6 + $0xf8] sm:$0xff] %v2913
    // Predicated region
    $region30: #{affine_forward.1} parent=1 // pred_check
      _
    $region31: #{affine_forward.1} parent=1 // pred_check_branch
      %2947 = sbr.rel (0) target = $region33
    $region32: #{affine_forward.1} parent=1 // pred_region
      _
    $region33: #{affine_forward.1} parent=1 // pred_fallthru
      _
    // Predicated region
    $region34: #{affine_forward.1} parent=1 // pred_check
      _
    $region35: #{affine_forward.1} parent=1 // pred_check_branch
      %2949 = sbr.rel (0) target = $region37
    $region36: #{affine_forward.1} parent=1 // pred_region
      _
    $region37: #{affine_forward.1} parent=1 // pred_fallthru
      _
    %2950 = vsyncpa [#allocation3], 1

</llo_original>
